<compile_context>
chip_gen: v6e
topology: v6e:2x2x1
jax: 0.10.0
libtpu: 0.0.40
codegen_flags: <defaults>
</compile_context>

<pallas_src>
import jax
import jax.numpy as jnp
from jax import lax
from jax.experimental import pallas as pl
from jax.experimental.pallas import tpu as pltpu

DILATIONS = (1, 2, 4, 8, 16, 32, 1)   # per residual block (matches the module)
N_BLOCKS = 2
EPS = 1e-5
LANE = 128                            # lane-dense output padding


# ----------------------------- Pallas kernel ------------------------------ #
def _joint_cnn_kernel(x_ref, w_in_ref, b_in_ref,
                      w_res_ref, b_res_ref, w_out_ref, o_ref):
    TB, L, Nj = x_ref.shape
    H = w_in_ref.shape[1]
    R = TB * L

    # Flatten the batch tile into one (R, Nj) slab of MXU rows (free reshape:
    # only leading dims are merged, lane layout untouched).
    x = x_ref[...].reshape(R, Nj).astype(jnp.float32)

    # Hoisted per-dilation shift-validity masks.  rowmod[r] = r % L prevents
    # the rolled taps from leaking across sample boundaries (they correspond
    # to the zero padding of the 'same' convolution).  Computed once, reused
    # by every residual conv with that dilation.
    rowmod = lax.broadcasted_iota(jnp.int32, (R, H), 0) % L
    masks = {d: (rowmod >= d, rowmod < L - d)
             for d in sorted(set(DILATIONS)) if d < L}

    def conv3(v, w, d):
        # Dilated k=3 'same' conv; the 3 taps are fused into one K=3*H matmul.
        # w: (3*H, H) with BN scale folded in.  Tap order: x[l-d], x[l], x[l+d].
        if d >= L:
            # Both shifted taps fall entirely into the zero padding ->
            # statically reduce to the center 1x1 conv.
            return jnp.dot(v, w[H:2 * H], preferred_element_type=jnp.float32)
        m_neg, m_pos = masks[d]
        vm = jnp.where(m_neg, jnp.roll(v, d, axis=0), 0.0)    # x[l-d]
        vp = jnp.where(m_pos, jnp.roll(v, -d, axis=0), 0.0)   # x[l+d]
        c = jnp.concatenate([vm, v, vp], axis=-1)             # (R, 3*H)
        return jnp.dot(c, w, preferred_element_type=jnp.float32)

    # Input layer: 1x1 conv (BN scale folded into weight) + BN shift + ReLU.
    h = jnp.dot(x, w_in_ref[...], preferred_element_type=jnp.float32)
    h = jnp.maximum(h + b_in_ref[...], 0.0)                   # (R, H)

    # Residual blocks, fully unrolled (all indices and dilations are static,
    # so every slice of w_res_ref / b_res_ref is a zero-cost static view).
    for blk in range(N_BLOCKS):
        y = h
        for i, d in enumerate(DILATIONS):
            idx = blk * len(DILATIONS) + i
            y = conv3(y, w_res_ref[idx], d)
            y = jnp.maximum(y + b_res_ref[idx], 0.0)
        h = h + y

    # Output 1x1 conv against the lane-dense pre-padded (H, 128) weight ->
    # unmasked vector stores on the way out.
    o = jnp.dot(h, w_out_ref[...], preferred_element_type=jnp.float32)
    o_ref[...] = o.reshape(TB, L, -1).astype(o_ref.dtype)


# ------------------------------ wrapper ----------------------------------- #
def joint_cnn_pallas(x_blc, w_in, b_in, w_res, b_res, w_out_pad, out_size,
                     batch_tile=None):
    """x_blc: (B, L, Nj) channels-last.  Returns (B, L, out_size)."""
    B, L, Nj = x_blc.shape
    Cp = w_out_pad.shape[1]

    # Process the whole batch in one grid step by default: per-step overhead is
    # ~0.35us and the activation slab here is tiny, so one big (B*L, C) slab
    # feeds the MXU full sublane groups with no pipeline bubbles.
    tb = B if batch_tile is None else batch_tile
    assert B % tb == 0

    def full_spec(a):
        nd = a.ndim
        return pl.BlockSpec(a.shape, lambda b, _nd=nd: (0,) * _nd)

    out_pad = pl.pallas_call(
        _joint_cnn_kernel,
        out_shape=jax.ShapeDtypeStruct((B, L, Cp), x_blc.dtype),
        grid=(B // tb,),
        in_specs=[
            pl.BlockSpec((tb, L, Nj), lambda b: (b, 0, 0)),
            full_spec(w_in), full_spec(b_in),
            full_spec(w_res), full_spec(b_res),
            full_spec(w_out_pad),
        ],
        out_specs=pl.BlockSpec((tb, L, Cp), lambda b: (b, 0, 0)),
        compiler_params=pltpu.CompilerParams(
            dimension_semantics=("parallel",)),   # shard batch tiles across TCs
    )(x_blc, w_in, b_in, w_res, b_res, w_out_pad)

    return out_pad[:, :, :out_size]


# ------------------------- params & JAX reference ------------------------- #
def init_params(key, num_joints, hidden, out_size):
    k = jax.random.split(key, 9)
    n_res = N_BLOCKS * len(DILATIONS)
    # PyTorch-layout conv weights (Cout, Cin, K), no bias (matches the module).
    w_in_t = 0.3 * jax.random.normal(k[0], (hidden, num_joints, 1), jnp.float32)
    w_res_t = 0.1 * jax.random.normal(k[1], (n_res, hidden, hidden, 3), jnp.float32)
    w_out_t = 0.3 * jax.random.normal(k[2], (out_size, hidden, 1), jnp.float32)

    def bn_fold(kk, n):
        kg, kb, km, kv = jax.random.split(kk, 4)
        gamma = 1.0 + 0.1 * jax.random.normal(kg, (n, hidden), jnp.float32)
        beta = 0.1 * jax.random.normal(kb, (n, hidden), jnp.float32)
        mean = 0.1 * jax.random.normal(km, (n, hidden), jnp.float32)
        var = jnp.abs(1.0 + 0.1 * jax.random.normal(kv, (n, hidden), jnp.float32))
        scale = gamma / jnp.sqrt(var + EPS)
        shift = beta - mean * scale
        return scale, shift

    s_in, b_in = bn_fold(k[3], 1)          # (1, H)
    s_res, b_res = bn_fold(k[4], n_res)    # (n_res, H)

    # ---- kernel layouts: BN scale folded into weights, taps packed ----
    # input: (Nj, H), each output-channel column scaled by its BN scale
    w_in_k = jnp.transpose(w_in_t[:, :, 0]) * s_in                 # (Nj, H)
    # res: (n_res, K, Cin, Cout) * scale[cout]  ->  (n_res, 3*Cin, Cout)
    w_res_kcio = jnp.transpose(w_res_t, (0, 3, 2, 1))              # (n_res,3,H,H)
    w_res_k = (w_res_kcio * s_res[:, None, None, :]).reshape(n_res, 3 * hidden, hidden)
    # output: (H, Cout) zero-padded to lane-dense (H, LANE)
    w_out_k = jnp.transpose(w_out_t[:, :, 0])                      # (H, Cout)
    co_pad = max(LANE, ((out_size + LANE - 1) // LANE) * LANE)
    w_out_k = jnp.pad(w_out_k, ((0, 0), (0, co_pad - out_size)))

    return dict(
        # torch layouts (for the reference)
        w_in_t=w_in_t, w_res_t=w_res_t, w_out_t=w_out_t,
        s_in=s_in[0], b_in=b_in[0], s_res=s_res, b_res=b_res,
        # kernel layouts (scale-folded)
        w_in_k=w_in_k, b_in_k=b_in,                                # (Nj,H), (1,H)
        w_res_k=w_res_k, b_res_k=b_res[:, None, :],                # (n_res,3H,H), (n_res,1,H)
        w_out_k=w_out_k,                                           # (H, co_pad)
    )


def reference_torch_semantics(x_ncl, p):
    """Plain-JAX reference mimicking the PyTorch NCW forward (eval-mode BN)."""
    def conv(x, w, dil, pad):
        return lax.conv_general_dilated(
            x, w, window_strides=(1,), padding=[(pad, pad)],
            rhs_dilation=(dil,), dimension_numbers=("NCH", "OIH", "NCH"),
            precision=lax.Precision.HIGHEST)

    def bn_relu(x, scale, shift):
        return jnp.maximum(x * scale[None, :, None] + shift[None, :, None], 0.0)

    h = bn_relu(conv(x_ncl, p["w_in_t"], 1, 0), p["s_in"], p["b_in"])
    for blk in range(N_BLOCKS):
        y = h
        for i, d in enumerate(DILATIONS):
            idx = blk * len(DILATIONS) + i
            y = bn_relu(conv(y, p["w_res_t"][idx], d, d),
                        p["s_res"][idx], p["b_res"][idx])
        h = h + y
    return conv(h, p["w_out_t"], 1, 0)


# --------------------------------- main ------------------------------------ #
if __name__ == "__main__":
    B, Nj, Nd = 2, 4, 16          # x: [B, num_joints, Nd]  (PyTorch NCW)
    hidden, out_size = 32, 8

    key = jax.random.PRNGKey(0)
    k_x, k_p = jax.random.split(key)
    x_ncl = jax.random.normal(k_x, (B, Nj, Nd), jnp.float32)
    p = init_params(k_p, Nj, hidden, out_size)

    # Pallas kernel (channels-last in, channels-last out -> back to NCW)
    x_blc = jnp.transpose(x_ncl, (0, 2, 1))                    # (B, Nd, Nj)
    out_blc = joint_cnn_pallas(
        x_blc, p["w_in_k"], p["b_in_k"],
        p["w_res_k"], p["b_res_k"], p["w_out_k"], out_size)
    out_ncl = jnp.transpose(out_blc, (0, 2, 1))                # (B, Cout, Nd)
    out_ncl = jax.block_until_ready(out_ncl)

    # Cross-check against a plain-JAX PyTorch-semantics reference.
    ref = jax.block_until_ready(reference_torch_semantics(x_ncl, p))
    assert out_ncl.shape == (B, out_size, Nd)
    assert jnp.allclose(out_ncl, ref, atol=2e-3, rtol=2e-3), (
        float(jnp.max(jnp.abs(out_ncl - ref))))

    print("KERNEL_OK")
</pallas_src>

<mosaic_0001>
module attributes {stable_mosaic.version = 11 : i64} {
  func.func @_joint_cnn_kernel(%arg0: i32, %arg1: memref<2x16x4xf32, #tpu.memory_space<vmem>>, %arg2: memref<4x32xf32, #tpu.memory_space<vmem>>, %arg3: memref<1x32xf32, #tpu.memory_space<vmem>>, %arg4: memref<14x96x32xf32, #tpu.memory_space<vmem>>, %arg5: memref<14x1x32xf32, #tpu.memory_space<vmem>>, %arg6: memref<32x128xf32, #tpu.memory_space<vmem>>, %arg7: memref<2x16x128xf32, #tpu.memory_space<vmem>>) attributes {dimension_semantics = [#tpu.dimension_semantics<parallel>], iteration_bounds = array<i64: 1>, scalar_prefetch = 0 : i64, scratch_operands = 0 : i64, tpu.core_type = #tpu.core_type<tc>, window_params = [{transform_indices = @transform_0, window_bounds = array<i64: 2, 16, 4>}, {pipeline_mode = #tpu.pipeline_mode<synchronous>, transform_indices = @transform_1, window_bounds = array<i64: 4, 32>}, {pipeline_mode = #tpu.pipeline_mode<synchronous>, transform_indices = @transform_2, window_bounds = array<i64: 1, 32>}, {pipeline_mode = #tpu.pipeline_mode<synchronous>, transform_indices = @transform_3, window_bounds = array<i64: 14, 96, 32>}, {pipeline_mode = #tpu.pipeline_mode<synchronous>, transform_indices = @transform_4, window_bounds = array<i64: 14, 1, 32>}, {pipeline_mode = #tpu.pipeline_mode<synchronous>, transform_indices = @transform_5, window_bounds = array<i64: 32, 128>}, {transform_indices = @transform_6, window_bounds = array<i64: 2, 16, 128>}]} {
    %c0 = arith.constant 0 : index
    %c0_0 = arith.constant 0 : index
    %c0_1 = arith.constant 0 : index
    %0 = vector.load %arg1[%c0, %c0_0, %c0_1] : memref<2x16x4xf32, #tpu.memory_space<vmem>>, vector<2x16x4xf32>
    %1 = vector.shape_cast %0 : vector<2x16x4xf32> to vector<32x4xf32>
    %2 = tpu.iota {dimensions = array<i32: 0>} : vector<32x32xi32>
    %c16_i32 = arith.constant 16 : i32
    %c0_i32 = arith.constant 0 : i32
    %3 = arith.cmpi eq, %c16_i32, %c0_i32 : i32
    %c1_i32 = arith.constant 1 : i32
    %4 = arith.select %3, %c1_i32, %c16_i32 : i32
    %5 = vector.broadcast %4 : i32 to vector<32x32xi32>
    %6 = arith.remsi %2, %5 : vector<32x32xi32>
    %c0_i32_2 = arith.constant 0 : i32
    %7 = vector.broadcast %c0_i32_2 : i32 to vector<32x32xi32>
    %8 = arith.cmpi ne, %6, %7 : vector<32x32xi32>
    %c0_i32_3 = arith.constant 0 : i32
    %9 = vector.broadcast %c0_i32_3 : i32 to vector<32x32xi32>
    %10 = arith.cmpi slt, %6, %9 : vector<32x32xi32>
    %c0_i32_4 = arith.constant 0 : i32
    %11 = arith.cmpi slt, %4, %c0_i32_4 : i32
    %12 = vector.broadcast %11 : i1 to vector<32x32xi1>
    %13 = vector.broadcast %12 : vector<32x32xi1> to vector<32x32xi1>
    %14 = arith.xori %10, %13 : vector<32x32xi1>
    %15 = arith.andi %14, %8 : vector<32x32xi1>
    %16 = vector.broadcast %4 : i32 to vector<32x32xi32>
    %17 = arith.addi %6, %16 : vector<32x32xi32>
    %18 = arith.select %15, %17, %6 : vector<32x32xi1>, vector<32x32xi32>
    %c1_i32_5 = arith.constant 1 : i32
    %19 = vector.broadcast %c1_i32_5 : i32 to vector<32x32xi32>
    %20 = arith.cmpi sge, %18, %19 : vector<32x32xi32>
    %c15_i32 = arith.constant 15 : i32
    %21 = vector.broadcast %c15_i32 : i32 to vector<32x32xi32>
    %22 = arith.cmpi slt, %18, %21 : vector<32x32xi32>
    %c2_i32 = arith.constant 2 : i32
    %23 = vector.broadcast %c2_i32 : i32 to vector<32x32xi32>
    %24 = arith.cmpi sge, %18, %23 : vector<32x32xi32>
    %c14_i32 = arith.constant 14 : i32
    %25 = vector.broadcast %c14_i32 : i32 to vector<32x32xi32>
    %26 = arith.cmpi slt, %18, %25 : vector<32x32xi32>
    %c4_i32 = arith.constant 4 : i32
    %27 = vector.broadcast %c4_i32 : i32 to vector<32x32xi32>
    %28 = arith.cmpi sge, %18, %27 : vector<32x32xi32>
    %c12_i32 = arith.constant 12 : i32
    %29 = vector.broadcast %c12_i32 : i32 to vector<32x32xi32>
    %30 = arith.cmpi slt, %18, %29 : vector<32x32xi32>
    %c8_i32 = arith.constant 8 : i32
    %31 = vector.broadcast %c8_i32 : i32 to vector<32x32xi32>
    %32 = arith.cmpi sge, %18, %31 : vector<32x32xi32>
    %c8_i32_6 = arith.constant 8 : i32
    %33 = vector.broadcast %c8_i32_6 : i32 to vector<32x32xi32>
    %34 = arith.cmpi slt, %18, %33 : vector<32x32xi32>
    %c0_7 = arith.constant 0 : index
    %c0_8 = arith.constant 0 : index
    %35 = vector.load %arg2[%c0_7, %c0_8] : memref<4x32xf32, #tpu.memory_space<vmem>>, vector<4x32xf32>
    %cst = arith.constant dense<0.000000e+00> : vector<32x32xf32>
    %36 = tpu.matmul %1, %35, %cst {dimension_numbers = #tpu.dot_dimension_numbers<[1], [0], [0], [1], [0, 0, 1, 1], [], []>} : vector<32x4xf32>, vector<4x32xf32>, vector<32x32xf32> -> vector<32x32xf32>
    %c0_9 = arith.constant 0 : index
    %c0_10 = arith.constant 0 : index
    %37 = vector.load %arg3[%c0_9, %c0_10] : memref<1x32xf32, #tpu.memory_space<vmem>>, vector<1x32xf32>
    %38 = vector.broadcast %37 : vector<1x32xf32> to vector<32x32xf32>
    %39 = arith.addf %36, %38 : vector<32x32xf32>
    %cst_11 = arith.constant 0.000000e+00 : f32
    %40 = vector.broadcast %cst_11 : f32 to vector<32x32xf32>
    %41 = arith.maximumf %39, %40 : vector<32x32xf32>
    %c0_12 = arith.constant 0 : index
    %c0_13 = arith.constant 0 : index
    %c0_14 = arith.constant 0 : index
    %42 = vector.load %arg4[%c0_12, %c0_13, %c0_14] : memref<14x96x32xf32, #tpu.memory_space<vmem>>, vector<1x96x32xf32>
    %43 = vector.shape_cast %42 : vector<1x96x32xf32> to vector<96x32xf32>
    %44 = vector.extract_strided_slice %41 {offsets = [31, 0], sizes = [1, 32], strides = [1, 1]} : vector<32x32xf32> to vector<1x32xf32>
    %45 = vector.extract_strided_slice %41 {offsets = [0, 0], sizes = [31, 32], strides = [1, 1]} : vector<32x32xf32> to vector<31x32xf32>
    %46 = tpu.concatenate %44, %45 in 0 : vector<1x32xf32>, vector<31x32xf32> -> vector<32x32xf32>
    %cst_15 = arith.constant 0.000000e+00 : f32
    %47 = vector.broadcast %cst_15 : f32 to vector<32x32xf32>
    %48 = arith.select %20, %46, %47 : vector<32x32xi1>, vector<32x32xf32>
    %49 = vector.extract_strided_slice %41 {offsets = [1, 0], sizes = [31, 32], strides = [1, 1]} : vector<32x32xf32> to vector<31x32xf32>
    %50 = vector.extract_strided_slice %41 {offsets = [0, 0], sizes = [1, 32], strides = [1, 1]} : vector<32x32xf32> to vector<1x32xf32>
    %51 = tpu.concatenate %49, %50 in 0 : vector<31x32xf32>, vector<1x32xf32> -> vector<32x32xf32>
    %cst_16 = arith.constant 0.000000e+00 : f32
    %52 = vector.broadcast %cst_16 : f32 to vector<32x32xf32>
    %53 = arith.select %22, %51, %52 : vector<32x32xi1>, vector<32x32xf32>
    %54 = tpu.concatenate %48, %41, %53 in 1 : vector<32x32xf32>, vector<32x32xf32>, vector<32x32xf32> -> vector<32x96xf32>
    %cst_17 = arith.constant dense<0.000000e+00> : vector<32x32xf32>
    %55 = tpu.matmul %54, %43, %cst_17 {dimension_numbers = #tpu.dot_dimension_numbers<[1], [0], [0], [1], [0, 0, 1, 1], [], []>} : vector<32x96xf32>, vector<96x32xf32>, vector<32x32xf32> -> vector<32x32xf32>
    %c0_18 = arith.constant 0 : index
    %c0_19 = arith.constant 0 : index
    %c0_20 = arith.constant 0 : index
    %56 = vector.load %arg5[%c0_18, %c0_19, %c0_20] : memref<14x1x32xf32, #tpu.memory_space<vmem>>, vector<1x1x32xf32>
    %57 = vector.shape_cast %56 : vector<1x1x32xf32> to vector<1x32xf32>
    %58 = vector.broadcast %57 : vector<1x32xf32> to vector<32x32xf32>
    %59 = arith.addf %55, %58 : vector<32x32xf32>
    %cst_21 = arith.constant 0.000000e+00 : f32
    %60 = vector.broadcast %cst_21 : f32 to vector<32x32xf32>
    %61 = arith.maximumf %59, %60 : vector<32x32xf32>
    %c1 = arith.constant 1 : index
    %c0_22 = arith.constant 0 : index
    %c0_23 = arith.constant 0 : index
    %62 = vector.load %arg4[%c1, %c0_22, %c0_23] : memref<14x96x32xf32, #tpu.memory_space<vmem>>, vector<1x96x32xf32>
    %63 = vector.shape_cast %62 : vector<1x96x32xf32> to vector<96x32xf32>
    %64 = vector.extract_strided_slice %61 {offsets = [30, 0], sizes = [2, 32], strides = [1, 1]} : vector<32x32xf32> to vector<2x32xf32>
    %65 = vector.extract_strided_slice %61 {offsets = [0, 0], sizes = [30, 32], strides = [1, 1]} : vector<32x32xf32> to vector<30x32xf32>
    %66 = tpu.concatenate %64, %65 in 0 : vector<2x32xf32>, vector<30x32xf32> -> vector<32x32xf32>
    %cst_24 = arith.constant 0.000000e+00 : f32
    %67 = vector.broadcast %cst_24 : f32 to vector<32x32xf32>
    %68 = arith.select %24, %66, %67 : vector<32x32xi1>, vector<32x32xf32>
    %69 = vector.extract_strided_slice %61 {offsets = [2, 0], sizes = [30, 32], strides = [1, 1]} : vector<32x32xf32> to vector<30x32xf32>
    %70 = vector.extract_strided_slice %61 {offsets = [0, 0], sizes = [2, 32], strides = [1, 1]} : vector<32x32xf32> to vector<2x32xf32>
    %71 = tpu.concatenate %69, %70 in 0 : vector<30x32xf32>, vector<2x32xf32> -> vector<32x32xf32>
    %cst_25 = arith.constant 0.000000e+00 : f32
    %72 = vector.broadcast %cst_25 : f32 to vector<32x32xf32>
    %73 = arith.select %26, %71, %72 : vector<32x32xi1>, vector<32x32xf32>
    %74 = tpu.concatenate %68, %61, %73 in 1 : vector<32x32xf32>, vector<32x32xf32>, vector<32x32xf32> -> vector<32x96xf32>
    %cst_26 = arith.constant dense<0.000000e+00> : vector<32x32xf32>
    %75 = tpu.matmul %74, %63, %cst_26 {dimension_numbers = #tpu.dot_dimension_numbers<[1], [0], [0], [1], [0, 0, 1, 1], [], []>} : vector<32x96xf32>, vector<96x32xf32>, vector<32x32xf32> -> vector<32x32xf32>
    %c1_27 = arith.constant 1 : index
    %c0_28 = arith.constant 0 : index
    %c0_29 = arith.constant 0 : index
    %76 = vector.load %arg5[%c1_27, %c0_28, %c0_29] : memref<14x1x32xf32, #tpu.memory_space<vmem>>, vector<1x1x32xf32>
    %77 = vector.shape_cast %76 : vector<1x1x32xf32> to vector<1x32xf32>
    %78 = vector.broadcast %77 : vector<1x32xf32> to vector<32x32xf32>
    %79 = arith.addf %75, %78 : vector<32x32xf32>
    %cst_30 = arith.constant 0.000000e+00 : f32
    %80 = vector.broadcast %cst_30 : f32 to vector<32x32xf32>
    %81 = arith.maximumf %79, %80 : vector<32x32xf32>
    %c2 = arith.constant 2 : index
    %c0_31 = arith.constant 0 : index
    %c0_32 = arith.constant 0 : index
    %82 = vector.load %arg4[%c2, %c0_31, %c0_32] : memref<14x96x32xf32, #tpu.memory_space<vmem>>, vector<1x96x32xf32>
    %83 = vector.shape_cast %82 : vector<1x96x32xf32> to vector<96x32xf32>
    %84 = vector.extract_strided_slice %81 {offsets = [28, 0], sizes = [4, 32], strides = [1, 1]} : vector<32x32xf32> to vector<4x32xf32>
    %85 = vector.extract_strided_slice %81 {offsets = [0, 0], sizes = [28, 32], strides = [1, 1]} : vector<32x32xf32> to vector<28x32xf32>
    %86 = tpu.concatenate %84, %85 in 0 : vector<4x32xf32>, vector<28x32xf32> -> vector<32x32xf32>
    %cst_33 = arith.constant 0.000000e+00 : f32
    %87 = vector.broadcast %cst_33 : f32 to vector<32x32xf32>
    %88 = arith.select %28, %86, %87 : vector<32x32xi1>, vector<32x32xf32>
    %89 = vector.extract_strided_slice %81 {offsets = [4, 0], sizes = [28, 32], strides = [1, 1]} : vector<32x32xf32> to vector<28x32xf32>
    %90 = vector.extract_strided_slice %81 {offsets = [0, 0], sizes = [4, 32], strides = [1, 1]} : vector<32x32xf32> to vector<4x32xf32>
    %91 = tpu.concatenate %89, %90 in 0 : vector<28x32xf32>, vector<4x32xf32> -> vector<32x32xf32>
    %cst_34 = arith.constant 0.000000e+00 : f32
    %92 = vector.broadcast %cst_34 : f32 to vector<32x32xf32>
    %93 = arith.select %30, %91, %92 : vector<32x32xi1>, vector<32x32xf32>
    %94 = tpu.concatenate %88, %81, %93 in 1 : vector<32x32xf32>, vector<32x32xf32>, vector<32x32xf32> -> vector<32x96xf32>
    %cst_35 = arith.constant dense<0.000000e+00> : vector<32x32xf32>
    %95 = tpu.matmul %94, %83, %cst_35 {dimension_numbers = #tpu.dot_dimension_numbers<[1], [0], [0], [1], [0, 0, 1, 1], [], []>} : vector<32x96xf32>, vector<96x32xf32>, vector<32x32xf32> -> vector<32x32xf32>
    %c2_36 = arith.constant 2 : index
    %c0_37 = arith.constant 0 : index
    %c0_38 = arith.constant 0 : index
    %96 = vector.load %arg5[%c2_36, %c0_37, %c0_38] : memref<14x1x32xf32, #tpu.memory_space<vmem>>, vector<1x1x32xf32>
    %97 = vector.shape_cast %96 : vector<1x1x32xf32> to vector<1x32xf32>
    %98 = vector.broadcast %97 : vector<1x32xf32> to vector<32x32xf32>
    %99 = arith.addf %95, %98 : vector<32x32xf32>
    %cst_39 = arith.constant 0.000000e+00 : f32
    %100 = vector.broadcast %cst_39 : f32 to vector<32x32xf32>
    %101 = arith.maximumf %99, %100 : vector<32x32xf32>
    %c3 = arith.constant 3 : index
    %c0_40 = arith.constant 0 : index
    %c0_41 = arith.constant 0 : index
    %102 = vector.load %arg4[%c3, %c0_40, %c0_41] : memref<14x96x32xf32, #tpu.memory_space<vmem>>, vector<1x96x32xf32>
    %103 = vector.shape_cast %102 : vector<1x96x32xf32> to vector<96x32xf32>
    %104 = vector.extract_strided_slice %101 {offsets = [24, 0], sizes = [8, 32], strides = [1, 1]} : vector<32x32xf32> to vector<8x32xf32>
    %105 = vector.extract_strided_slice %101 {offsets = [0, 0], sizes = [24, 32], strides = [1, 1]} : vector<32x32xf32> to vector<24x32xf32>
    %106 = tpu.concatenate %104, %105 in 0 : vector<8x32xf32>, vector<24x32xf32> -> vector<32x32xf32>
    %cst_42 = arith.constant 0.000000e+00 : f32
    %107 = vector.broadcast %cst_42 : f32 to vector<32x32xf32>
    %108 = arith.select %32, %106, %107 : vector<32x32xi1>, vector<32x32xf32>
    %109 = vector.extract_strided_slice %101 {offsets = [8, 0], sizes = [24, 32], strides = [1, 1]} : vector<32x32xf32> to vector<24x32xf32>
    %110 = vector.extract_strided_slice %101 {offsets = [0, 0], sizes = [8, 32], strides = [1, 1]} : vector<32x32xf32> to vector<8x32xf32>
    %111 = tpu.concatenate %109, %110 in 0 : vector<24x32xf32>, vector<8x32xf32> -> vector<32x32xf32>
    %cst_43 = arith.constant 0.000000e+00 : f32
    %112 = vector.broadcast %cst_43 : f32 to vector<32x32xf32>
    %113 = arith.select %34, %111, %112 : vector<32x32xi1>, vector<32x32xf32>
    %114 = tpu.concatenate %108, %101, %113 in 1 : vector<32x32xf32>, vector<32x32xf32>, vector<32x32xf32> -> vector<32x96xf32>
    %cst_44 = arith.constant dense<0.000000e+00> : vector<32x32xf32>
    %115 = tpu.matmul %114, %103, %cst_44 {dimension_numbers = #tpu.dot_dimension_numbers<[1], [0], [0], [1], [0, 0, 1, 1], [], []>} : vector<32x96xf32>, vector<96x32xf32>, vector<32x32xf32> -> vector<32x32xf32>
    %c3_45 = arith.constant 3 : index
    %c0_46 = arith.constant 0 : index
    %c0_47 = arith.constant 0 : index
    %116 = vector.load %arg5[%c3_45, %c0_46, %c0_47] : memref<14x1x32xf32, #tpu.memory_space<vmem>>, vector<1x1x32xf32>
    %117 = vector.shape_cast %116 : vector<1x1x32xf32> to vector<1x32xf32>
    %118 = vector.broadcast %117 : vector<1x32xf32> to vector<32x32xf32>
    %119 = arith.addf %115, %118 : vector<32x32xf32>
    %cst_48 = arith.constant 0.000000e+00 : f32
    %120 = vector.broadcast %cst_48 : f32 to vector<32x32xf32>
    %121 = arith.maximumf %119, %120 : vector<32x32xf32>
    %c4 = arith.constant 4 : index
    %c0_49 = arith.constant 0 : index
    %c0_50 = arith.constant 0 : index
    %122 = vector.load %arg4[%c4, %c0_49, %c0_50] : memref<14x96x32xf32, #tpu.memory_space<vmem>>, vector<1x96x32xf32>
    %123 = vector.shape_cast %122 : vector<1x96x32xf32> to vector<96x32xf32>
    %124 = vector.extract_strided_slice %123 {offsets = [32, 0], sizes = [32, 32], strides = [1, 1]} : vector<96x32xf32> to vector<32x32xf32>
    %cst_51 = arith.constant dense<0.000000e+00> : vector<32x32xf32>
    %125 = tpu.matmul %121, %124, %cst_51 {dimension_numbers = #tpu.dot_dimension_numbers<[1], [0], [0], [1], [0, 0, 1, 1], [], []>} : vector<32x32xf32>, vector<32x32xf32>, vector<32x32xf32> -> vector<32x32xf32>
    %c4_52 = arith.constant 4 : index
    %c0_53 = arith.constant 0 : index
    %c0_54 = arith.constant 0 : index
    %126 = vector.load %arg5[%c4_52, %c0_53, %c0_54] : memref<14x1x32xf32, #tpu.memory_space<vmem>>, vector<1x1x32xf32>
    %127 = vector.shape_cast %126 : vector<1x1x32xf32> to vector<1x32xf32>
    %128 = vector.broadcast %127 : vector<1x32xf32> to vector<32x32xf32>
    %129 = arith.addf %125, %128 : vector<32x32xf32>
    %cst_55 = arith.constant 0.000000e+00 : f32
    %130 = vector.broadcast %cst_55 : f32 to vector<32x32xf32>
    %131 = arith.maximumf %129, %130 : vector<32x32xf32>
    %c5 = arith.constant 5 : index
    %c0_56 = arith.constant 0 : index
    %c0_57 = arith.constant 0 : index
    %132 = vector.load %arg4[%c5, %c0_56, %c0_57] : memref<14x96x32xf32, #tpu.memory_space<vmem>>, vector<1x96x32xf32>
    %133 = vector.shape_cast %132 : vector<1x96x32xf32> to vector<96x32xf32>
    %134 = vector.extract_strided_slice %133 {offsets = [32, 0], sizes = [32, 32], strides = [1, 1]} : vector<96x32xf32> to vector<32x32xf32>
    %cst_58 = arith.constant dense<0.000000e+00> : vector<32x32xf32>
    %135 = tpu.matmul %131, %134, %cst_58 {dimension_numbers = #tpu.dot_dimension_numbers<[1], [0], [0], [1], [0, 0, 1, 1], [], []>} : vector<32x32xf32>, vector<32x32xf32>, vector<32x32xf32> -> vector<32x32xf32>
    %c5_59 = arith.constant 5 : index
    %c0_60 = arith.constant 0 : index
    %c0_61 = arith.constant 0 : index
    %136 = vector.load %arg5[%c5_59, %c0_60, %c0_61] : memref<14x1x32xf32, #tpu.memory_space<vmem>>, vector<1x1x32xf32>
    %137 = vector.shape_cast %136 : vector<1x1x32xf32> to vector<1x32xf32>
    %138 = vector.broadcast %137 : vector<1x32xf32> to vector<32x32xf32>
    %139 = arith.addf %135, %138 : vector<32x32xf32>
    %cst_62 = arith.constant 0.000000e+00 : f32
    %140 = vector.broadcast %cst_62 : f32 to vector<32x32xf32>
    %141 = arith.maximumf %139, %140 : vector<32x32xf32>
    %c6 = arith.constant 6 : index
    %c0_63 = arith.constant 0 : index
    %c0_64 = arith.constant 0 : index
    %142 = vector.load %arg4[%c6, %c0_63, %c0_64] : memref<14x96x32xf32, #tpu.memory_space<vmem>>, vector<1x96x32xf32>
    %143 = vector.shape_cast %142 : vector<1x96x32xf32> to vector<96x32xf32>
    %144 = vector.extract_strided_slice %141 {offsets = [31, 0], sizes = [1, 32], strides = [1, 1]} : vector<32x32xf32> to vector<1x32xf32>
    %145 = vector.extract_strided_slice %141 {offsets = [0, 0], sizes = [31, 32], strides = [1, 1]} : vector<32x32xf32> to vector<31x32xf32>
    %146 = tpu.concatenate %144, %145 in 0 : vector<1x32xf32>, vector<31x32xf32> -> vector<32x32xf32>
    %cst_65 = arith.constant 0.000000e+00 : f32
    %147 = vector.broadcast %cst_65 : f32 to vector<32x32xf32>
    %148 = arith.select %20, %146, %147 : vector<32x32xi1>, vector<32x32xf32>
    %149 = vector.extract_strided_slice %141 {offsets = [1, 0], sizes = [31, 32], strides = [1, 1]} : vector<32x32xf32> to vector<31x32xf32>
    %150 = vector.extract_strided_slice %141 {offsets = [0, 0], sizes = [1, 32], strides = [1, 1]} : vector<32x32xf32> to vector<1x32xf32>
    %151 = tpu.concatenate %149, %150 in 0 : vector<31x32xf32>, vector<1x32xf32> -> vector<32x32xf32>
    %cst_66 = arith.constant 0.000000e+00 : f32
    %152 = vector.broadcast %cst_66 : f32 to vector<32x32xf32>
    %153 = arith.select %22, %151, %152 : vector<32x32xi1>, vector<32x32xf32>
    %154 = tpu.concatenate %148, %141, %153 in 1 : vector<32x32xf32>, vector<32x32xf32>, vector<32x32xf32> -> vector<32x96xf32>
    %cst_67 = arith.constant dense<0.000000e+00> : vector<32x32xf32>
    %155 = tpu.matmul %154, %143, %cst_67 {dimension_numbers = #tpu.dot_dimension_numbers<[1], [0], [0], [1], [0, 0, 1, 1], [], []>} : vector<32x96xf32>, vector<96x32xf32>, vector<32x32xf32> -> vector<32x32xf32>
    %c6_68 = arith.constant 6 : index
    %c0_69 = arith.constant 0 : index
    %c0_70 = arith.constant 0 : index
    %156 = vector.load %arg5[%c6_68, %c0_69, %c0_70] : memref<14x1x32xf32, #tpu.memory_space<vmem>>, vector<1x1x32xf32>
    %157 = vector.shape_cast %156 : vector<1x1x32xf32> to vector<1x32xf32>
    %158 = vector.broadcast %157 : vector<1x32xf32> to vector<32x32xf32>
    %159 = arith.addf %155, %158 : vector<32x32xf32>
    %cst_71 = arith.constant 0.000000e+00 : f32
    %160 = vector.broadcast %cst_71 : f32 to vector<32x32xf32>
    %161 = arith.maximumf %159, %160 : vector<32x32xf32>
    %162 = arith.addf %41, %161 : vector<32x32xf32>
    %c7 = arith.constant 7 : index
    %c0_72 = arith.constant 0 : index
    %c0_73 = arith.constant 0 : index
    %163 = vector.load %arg4[%c7, %c0_72, %c0_73] : memref<14x96x32xf32, #tpu.memory_space<vmem>>, vector<1x96x32xf32>
    %164 = vector.shape_cast %163 : vector<1x96x32xf32> to vector<96x32xf32>
    %165 = vector.extract_strided_slice %162 {offsets = [31, 0], sizes = [1, 32], strides = [1, 1]} : vector<32x32xf32> to vector<1x32xf32>
    %166 = vector.extract_strided_slice %162 {offsets = [0, 0], sizes = [31, 32], strides = [1, 1]} : vector<32x32xf32> to vector<31x32xf32>
    %167 = tpu.concatenate %165, %166 in 0 : vector<1x32xf32>, vector<31x32xf32> -> vector<32x32xf32>
    %cst_74 = arith.constant 0.000000e+00 : f32
    %168 = vector.broadcast %cst_74 : f32 to vector<32x32xf32>
    %169 = arith.select %20, %167, %168 : vector<32x32xi1>, vector<32x32xf32>
    %170 = vector.extract_strided_slice %162 {offsets = [1, 0], sizes = [31, 32], strides = [1, 1]} : vector<32x32xf32> to vector<31x32xf32>
    %171 = vector.extract_strided_slice %162 {offsets = [0, 0], sizes = [1, 32], strides = [1, 1]} : vector<32x32xf32> to vector<1x32xf32>
    %172 = tpu.concatenate %170, %171 in 0 : vector<31x32xf32>, vector<1x32xf32> -> vector<32x32xf32>
    %cst_75 = arith.constant 0.000000e+00 : f32
    %173 = vector.broadcast %cst_75 : f32 to vector<32x32xf32>
    %174 = arith.select %22, %172, %173 : vector<32x32xi1>, vector<32x32xf32>
    %175 = tpu.concatenate %169, %162, %174 in 1 : vector<32x32xf32>, vector<32x32xf32>, vector<32x32xf32> -> vector<32x96xf32>
    %cst_76 = arith.constant dense<0.000000e+00> : vector<32x32xf32>
    %176 = tpu.matmul %175, %164, %cst_76 {dimension_numbers = #tpu.dot_dimension_numbers<[1], [0], [0], [1], [0, 0, 1, 1], [], []>} : vector<32x96xf32>, vector<96x32xf32>, vector<32x32xf32> -> vector<32x32xf32>
    %c7_77 = arith.constant 7 : index
    %c0_78 = arith.constant 0 : index
    %c0_79 = arith.constant 0 : index
    %177 = vector.load %arg5[%c7_77, %c0_78, %c0_79] : memref<14x1x32xf32, #tpu.memory_space<vmem>>, vector<1x1x32xf32>
    %178 = vector.shape_cast %177 : vector<1x1x32xf32> to vector<1x32xf32>
    %179 = vector.broadcast %178 : vector<1x32xf32> to vector<32x32xf32>
    %180 = arith.addf %176, %179 : vector<32x32xf32>
    %cst_80 = arith.constant 0.000000e+00 : f32
    %181 = vector.broadcast %cst_80 : f32 to vector<32x32xf32>
    %182 = arith.maximumf %180, %181 : vector<32x32xf32>
    %c8 = arith.constant 8 : index
    %c0_81 = arith.constant 0 : index
    %c0_82 = arith.constant 0 : index
    %183 = vector.load %arg4[%c8, %c0_81, %c0_82] : memref<14x96x32xf32, #tpu.memory_space<vmem>>, vector<1x96x32xf32>
    %184 = vector.shape_cast %183 : vector<1x96x32xf32> to vector<96x32xf32>
    %185 = vector.extract_strided_slice %182 {offsets = [30, 0], sizes = [2, 32], strides = [1, 1]} : vector<32x32xf32> to vector<2x32xf32>
    %186 = vector.extract_strided_slice %182 {offsets = [0, 0], sizes = [30, 32], strides = [1, 1]} : vector<32x32xf32> to vector<30x32xf32>
    %187 = tpu.concatenate %185, %186 in 0 : vector<2x32xf32>, vector<30x32xf32> -> vector<32x32xf32>
    %cst_83 = arith.constant 0.000000e+00 : f32
    %188 = vector.broadcast %cst_83 : f32 to vector<32x32xf32>
    %189 = arith.select %24, %187, %188 : vector<32x32xi1>, vector<32x32xf32>
    %190 = vector.extract_strided_slice %182 {offsets = [2, 0], sizes = [30, 32], strides = [1, 1]} : vector<32x32xf32> to vector<30x32xf32>
    %191 = vector.extract_strided_slice %182 {offsets = [0, 0], sizes = [2, 32], strides = [1, 1]} : vector<32x32xf32> to vector<2x32xf32>
    %192 = tpu.concatenate %190, %191 in 0 : vector<30x32xf32>, vector<2x32xf32> -> vector<32x32xf32>
    %cst_84 = arith.constant 0.000000e+00 : f32
    %193 = vector.broadcast %cst_84 : f32 to vector<32x32xf32>
    %194 = arith.select %26, %192, %193 : vector<32x32xi1>, vector<32x32xf32>
    %195 = tpu.concatenate %189, %182, %194 in 1 : vector<32x32xf32>, vector<32x32xf32>, vector<32x32xf32> -> vector<32x96xf32>
    %cst_85 = arith.constant dense<0.000000e+00> : vector<32x32xf32>
    %196 = tpu.matmul %195, %184, %cst_85 {dimension_numbers = #tpu.dot_dimension_numbers<[1], [0], [0], [1], [0, 0, 1, 1], [], []>} : vector<32x96xf32>, vector<96x32xf32>, vector<32x32xf32> -> vector<32x32xf32>
    %c8_86 = arith.constant 8 : index
    %c0_87 = arith.constant 0 : index
    %c0_88 = arith.constant 0 : index
    %197 = vector.load %arg5[%c8_86, %c0_87, %c0_88] : memref<14x1x32xf32, #tpu.memory_space<vmem>>, vector<1x1x32xf32>
    %198 = vector.shape_cast %197 : vector<1x1x32xf32> to vector<1x32xf32>
    %199 = vector.broadcast %198 : vector<1x32xf32> to vector<32x32xf32>
    %200 = arith.addf %196, %199 : vector<32x32xf32>
    %cst_89 = arith.constant 0.000000e+00 : f32
    %201 = vector.broadcast %cst_89 : f32 to vector<32x32xf32>
    %202 = arith.maximumf %200, %201 : vector<32x32xf32>
    %c9 = arith.constant 9 : index
    %c0_90 = arith.constant 0 : index
    %c0_91 = arith.constant 0 : index
    %203 = vector.load %arg4[%c9, %c0_90, %c0_91] : memref<14x96x32xf32, #tpu.memory_space<vmem>>, vector<1x96x32xf32>
    %204 = vector.shape_cast %203 : vector<1x96x32xf32> to vector<96x32xf32>
    %205 = vector.extract_strided_slice %202 {offsets = [28, 0], sizes = [4, 32], strides = [1, 1]} : vector<32x32xf32> to vector<4x32xf32>
    %206 = vector.extract_strided_slice %202 {offsets = [0, 0], sizes = [28, 32], strides = [1, 1]} : vector<32x32xf32> to vector<28x32xf32>
    %207 = tpu.concatenate %205, %206 in 0 : vector<4x32xf32>, vector<28x32xf32> -> vector<32x32xf32>
    %cst_92 = arith.constant 0.000000e+00 : f32
    %208 = vector.broadcast %cst_92 : f32 to vector<32x32xf32>
    %209 = arith.select %28, %207, %208 : vector<32x32xi1>, vector<32x32xf32>
    %210 = vector.extract_strided_slice %202 {offsets = [4, 0], sizes = [28, 32], strides = [1, 1]} : vector<32x32xf32> to vector<28x32xf32>
    %211 = vector.extract_strided_slice %202 {offsets = [0, 0], sizes = [4, 32], strides = [1, 1]} : vector<32x32xf32> to vector<4x32xf32>
    %212 = tpu.concatenate %210, %211 in 0 : vector<28x32xf32>, vector<4x32xf32> -> vector<32x32xf32>
    %cst_93 = arith.constant 0.000000e+00 : f32
    %213 = vector.broadcast %cst_93 : f32 to vector<32x32xf32>
    %214 = arith.select %30, %212, %213 : vector<32x32xi1>, vector<32x32xf32>
    %215 = tpu.concatenate %209, %202, %214 in 1 : vector<32x32xf32>, vector<32x32xf32>, vector<32x32xf32> -> vector<32x96xf32>
    %cst_94 = arith.constant dense<0.000000e+00> : vector<32x32xf32>
    %216 = tpu.matmul %215, %204, %cst_94 {dimension_numbers = #tpu.dot_dimension_numbers<[1], [0], [0], [1], [0, 0, 1, 1], [], []>} : vector<32x96xf32>, vector<96x32xf32>, vector<32x32xf32> -> vector<32x32xf32>
    %c9_95 = arith.constant 9 : index
    %c0_96 = arith.constant 0 : index
    %c0_97 = arith.constant 0 : index
    %217 = vector.load %arg5[%c9_95, %c0_96, %c0_97] : memref<14x1x32xf32, #tpu.memory_space<vmem>>, vector<1x1x32xf32>
    %218 = vector.shape_cast %217 : vector<1x1x32xf32> to vector<1x32xf32>
    %219 = vector.broadcast %218 : vector<1x32xf32> to vector<32x32xf32>
    %220 = arith.addf %216, %219 : vector<32x32xf32>
    %cst_98 = arith.constant 0.000000e+00 : f32
    %221 = vector.broadcast %cst_98 : f32 to vector<32x32xf32>
    %222 = arith.maximumf %220, %221 : vector<32x32xf32>
    %c10 = arith.constant 10 : index
    %c0_99 = arith.constant 0 : index
    %c0_100 = arith.constant 0 : index
    %223 = vector.load %arg4[%c10, %c0_99, %c0_100] : memref<14x96x32xf32, #tpu.memory_space<vmem>>, vector<1x96x32xf32>
    %224 = vector.shape_cast %223 : vector<1x96x32xf32> to vector<96x32xf32>
    %225 = vector.extract_strided_slice %222 {offsets = [24, 0], sizes = [8, 32], strides = [1, 1]} : vector<32x32xf32> to vector<8x32xf32>
    %226 = vector.extract_strided_slice %222 {offsets = [0, 0], sizes = [24, 32], strides = [1, 1]} : vector<32x32xf32> to vector<24x32xf32>
    %227 = tpu.concatenate %225, %226 in 0 : vector<8x32xf32>, vector<24x32xf32> -> vector<32x32xf32>
    %cst_101 = arith.constant 0.000000e+00 : f32
    %228 = vector.broadcast %cst_101 : f32 to vector<32x32xf32>
    %229 = arith.select %32, %227, %228 : vector<32x32xi1>, vector<32x32xf32>
    %230 = vector.extract_strided_slice %222 {offsets = [8, 0], sizes = [24, 32], strides = [1, 1]} : vector<32x32xf32> to vector<24x32xf32>
    %231 = vector.extract_strided_slice %222 {offsets = [0, 0], sizes = [8, 32], strides = [1, 1]} : vector<32x32xf32> to vector<8x32xf32>
    %232 = tpu.concatenate %230, %231 in 0 : vector<24x32xf32>, vector<8x32xf32> -> vector<32x32xf32>
    %cst_102 = arith.constant 0.000000e+00 : f32
    %233 = vector.broadcast %cst_102 : f32 to vector<32x32xf32>
    %234 = arith.select %34, %232, %233 : vector<32x32xi1>, vector<32x32xf32>
    %235 = tpu.concatenate %229, %222, %234 in 1 : vector<32x32xf32>, vector<32x32xf32>, vector<32x32xf32> -> vector<32x96xf32>
    %cst_103 = arith.constant dense<0.000000e+00> : vector<32x32xf32>
    %236 = tpu.matmul %235, %224, %cst_103 {dimension_numbers = #tpu.dot_dimension_numbers<[1], [0], [0], [1], [0, 0, 1, 1], [], []>} : vector<32x96xf32>, vector<96x32xf32>, vector<32x32xf32> -> vector<32x32xf32>
    %c10_104 = arith.constant 10 : index
    %c0_105 = arith.constant 0 : index
    %c0_106 = arith.constant 0 : index
    %237 = vector.load %arg5[%c10_104, %c0_105, %c0_106] : memref<14x1x32xf32, #tpu.memory_space<vmem>>, vector<1x1x32xf32>
    %238 = vector.shape_cast %237 : vector<1x1x32xf32> to vector<1x32xf32>
    %239 = vector.broadcast %238 : vector<1x32xf32> to vector<32x32xf32>
    %240 = arith.addf %236, %239 : vector<32x32xf32>
    %cst_107 = arith.constant 0.000000e+00 : f32
    %241 = vector.broadcast %cst_107 : f32 to vector<32x32xf32>
    %242 = arith.maximumf %240, %241 : vector<32x32xf32>
    %c11 = arith.constant 11 : index
    %c0_108 = arith.constant 0 : index
    %c0_109 = arith.constant 0 : index
    %243 = vector.load %arg4[%c11, %c0_108, %c0_109] : memref<14x96x32xf32, #tpu.memory_space<vmem>>, vector<1x96x32xf32>
    %244 = vector.shape_cast %243 : vector<1x96x32xf32> to vector<96x32xf32>
    %245 = vector.extract_strided_slice %244 {offsets = [32, 0], sizes = [32, 32], strides = [1, 1]} : vector<96x32xf32> to vector<32x32xf32>
    %cst_110 = arith.constant dense<0.000000e+00> : vector<32x32xf32>
    %246 = tpu.matmul %242, %245, %cst_110 {dimension_numbers = #tpu.dot_dimension_numbers<[1], [0], [0], [1], [0, 0, 1, 1], [], []>} : vector<32x32xf32>, vector<32x32xf32>, vector<32x32xf32> -> vector<32x32xf32>
    %c11_111 = arith.constant 11 : index
    %c0_112 = arith.constant 0 : index
    %c0_113 = arith.constant 0 : index
    %247 = vector.load %arg5[%c11_111, %c0_112, %c0_113] : memref<14x1x32xf32, #tpu.memory_space<vmem>>, vector<1x1x32xf32>
    %248 = vector.shape_cast %247 : vector<1x1x32xf32> to vector<1x32xf32>
    %249 = vector.broadcast %248 : vector<1x32xf32> to vector<32x32xf32>
    %250 = arith.addf %246, %249 : vector<32x32xf32>
    %cst_114 = arith.constant 0.000000e+00 : f32
    %251 = vector.broadcast %cst_114 : f32 to vector<32x32xf32>
    %252 = arith.maximumf %250, %251 : vector<32x32xf32>
    %c12 = arith.constant 12 : index
    %c0_115 = arith.constant 0 : index
    %c0_116 = arith.constant 0 : index
    %253 = vector.load %arg4[%c12, %c0_115, %c0_116] : memref<14x96x32xf32, #tpu.memory_space<vmem>>, vector<1x96x32xf32>
    %254 = vector.shape_cast %253 : vector<1x96x32xf32> to vector<96x32xf32>
    %255 = vector.extract_strided_slice %254 {offsets = [32, 0], sizes = [32, 32], strides = [1, 1]} : vector<96x32xf32> to vector<32x32xf32>
    %cst_117 = arith.constant dense<0.000000e+00> : vector<32x32xf32>
    %256 = tpu.matmul %252, %255, %cst_117 {dimension_numbers = #tpu.dot_dimension_numbers<[1], [0], [0], [1], [0, 0, 1, 1], [], []>} : vector<32x32xf32>, vector<32x32xf32>, vector<32x32xf32> -> vector<32x32xf32>
    %c12_118 = arith.constant 12 : index
    %c0_119 = arith.constant 0 : index
    %c0_120 = arith.constant 0 : index
    %257 = vector.load %arg5[%c12_118, %c0_119, %c0_120] : memref<14x1x32xf32, #tpu.memory_space<vmem>>, vector<1x1x32xf32>
    %258 = vector.shape_cast %257 : vector<1x1x32xf32> to vector<1x32xf32>
    %259 = vector.broadcast %258 : vector<1x32xf32> to vector<32x32xf32>
    %260 = arith.addf %256, %259 : vector<32x32xf32>
    %cst_121 = arith.constant 0.000000e+00 : f32
    %261 = vector.broadcast %cst_121 : f32 to vector<32x32xf32>
    %262 = arith.maximumf %260, %261 : vector<32x32xf32>
    %c13 = arith.constant 13 : index
    %c0_122 = arith.constant 0 : index
    %c0_123 = arith.constant 0 : index
    %263 = vector.load %arg4[%c13, %c0_122, %c0_123] : memref<14x96x32xf32, #tpu.memory_space<vmem>>, vector<1x96x32xf32>
    %264 = vector.shape_cast %263 : vector<1x96x32xf32> to vector<96x32xf32>
    %265 = vector.extract_strided_slice %262 {offsets = [31, 0], sizes = [1, 32], strides = [1, 1]} : vector<32x32xf32> to vector<1x32xf32>
    %266 = vector.extract_strided_slice %262 {offsets = [0, 0], sizes = [31, 32], strides = [1, 1]} : vector<32x32xf32> to vector<31x32xf32>
    %267 = tpu.concatenate %265, %266 in 0 : vector<1x32xf32>, vector<31x32xf32> -> vector<32x32xf32>
    %cst_124 = arith.constant 0.000000e+00 : f32
    %268 = vector.broadcast %cst_124 : f32 to vector<32x32xf32>
    %269 = arith.select %20, %267, %268 : vector<32x32xi1>, vector<32x32xf32>
    %270 = vector.extract_strided_slice %262 {offsets = [1, 0], sizes = [31, 32], strides = [1, 1]} : vector<32x32xf32> to vector<31x32xf32>
    %271 = vector.extract_strided_slice %262 {offsets = [0, 0], sizes = [1, 32], strides = [1, 1]} : vector<32x32xf32> to vector<1x32xf32>
    %272 = tpu.concatenate %270, %271 in 0 : vector<31x32xf32>, vector<1x32xf32> -> vector<32x32xf32>
    %cst_125 = arith.constant 0.000000e+00 : f32
    %273 = vector.broadcast %cst_125 : f32 to vector<32x32xf32>
    %274 = arith.select %22, %272, %273 : vector<32x32xi1>, vector<32x32xf32>
    %275 = tpu.concatenate %269, %262, %274 in 1 : vector<32x32xf32>, vector<32x32xf32>, vector<32x32xf32> -> vector<32x96xf32>
    %cst_126 = arith.constant dense<0.000000e+00> : vector<32x32xf32>
    %276 = tpu.matmul %275, %264, %cst_126 {dimension_numbers = #tpu.dot_dimension_numbers<[1], [0], [0], [1], [0, 0, 1, 1], [], []>} : vector<32x96xf32>, vector<96x32xf32>, vector<32x32xf32> -> vector<32x32xf32>
    %c13_127 = arith.constant 13 : index
    %c0_128 = arith.constant 0 : index
    %c0_129 = arith.constant 0 : index
    %277 = vector.load %arg5[%c13_127, %c0_128, %c0_129] : memref<14x1x32xf32, #tpu.memory_space<vmem>>, vector<1x1x32xf32>
    %278 = vector.shape_cast %277 : vector<1x1x32xf32> to vector<1x32xf32>
    %279 = vector.broadcast %278 : vector<1x32xf32> to vector<32x32xf32>
    %280 = arith.addf %276, %279 : vector<32x32xf32>
    %cst_130 = arith.constant 0.000000e+00 : f32
    %281 = vector.broadcast %cst_130 : f32 to vector<32x32xf32>
    %282 = arith.maximumf %280, %281 : vector<32x32xf32>
    %283 = arith.addf %162, %282 : vector<32x32xf32>
    %c0_131 = arith.constant 0 : index
    %c0_132 = arith.constant 0 : index
    %284 = vector.load %arg6[%c0_131, %c0_132] : memref<32x128xf32, #tpu.memory_space<vmem>>, vector<32x128xf32>
    %cst_133 = arith.constant dense<0.000000e+00> : vector<32x128xf32>
    %285 = tpu.matmul %283, %284, %cst_133 {dimension_numbers = #tpu.dot_dimension_numbers<[1], [0], [0], [1], [0, 0, 1, 1], [], []>} : vector<32x32xf32>, vector<32x128xf32>, vector<32x128xf32> -> vector<32x128xf32>
    %286 = vector.shape_cast %285 : vector<32x128xf32> to vector<2x16x128xf32>
    %c0_134 = arith.constant 0 : index
    %c0_135 = arith.constant 0 : index
    %c0_136 = arith.constant 0 : index
    %287 = vector.load %arg7[%c0_134, %c0_135, %c0_136] : memref<2x16x128xf32, #tpu.memory_space<vmem>>, vector<2x16x128xf32>
    tpu.vector_store %arg7[%c0_134, %c0_135, %c0_136], %286 {strides = array<i32>} : memref<2x16x128xf32, #tpu.memory_space<vmem>>, vector<2x16x128xf32>,
    return
  }
  func.func @transform_0(%arg0: i32) -> (i32, i32, i32) {
    %c0_i32 = arith.constant 0 : i32
    %c0_i32_0 = arith.constant 0 : i32
    %c0_i32_1 = arith.constant 0 : i32
    return %arg0, %c0_i32, %c0_i32_0 : i32, i32, i32
  }
  func.func @transform_1(%arg0: i32) -> (i32, i32) {
    %c0_i32 = arith.constant 0 : i32
    %c0_i32_0 = arith.constant 0 : i32
    %c0_i32_1 = arith.constant 0 : i32
    return %c0_i32, %c0_i32_0 : i32, i32
  }
  func.func @transform_2(%arg0: i32) -> (i32, i32) {
    %c0_i32 = arith.constant 0 : i32
    %c0_i32_0 = arith.constant 0 : i32
    %c0_i32_1 = arith.constant 0 : i32
    return %c0_i32, %c0_i32_0 : i32, i32
  }
  func.func @transform_3(%arg0: i32) -> (i32, i32, i32) {
    %c0_i32 = arith.constant 0 : i32
    %c0_i32_0 = arith.constant 0 : i32
    %c0_i32_1 = arith.constant 0 : i32
    %c0_i32_2 = arith.constant 0 : i32
    return %c0_i32, %c0_i32_0, %c0_i32_1 : i32, i32, i32
  }
  func.func @transform_4(%arg0: i32) -> (i32, i32, i32) {
    %c0_i32 = arith.constant 0 : i32
    %c0_i32_0 = arith.constant 0 : i32
    %c0_i32_1 = arith.constant 0 : i32
    %c0_i32_2 = arith.constant 0 : i32
    return %c0_i32, %c0_i32_0, %c0_i32_1 : i32, i32, i32
  }
  func.func @transform_5(%arg0: i32) -> (i32, i32) {
    %c0_i32 = arith.constant 0 : i32
    %c0_i32_0 = arith.constant 0 : i32
    %c0_i32_1 = arith.constant 0 : i32
    return %c0_i32, %c0_i32_0 : i32, i32
  }
  func.func @transform_6(%arg0: i32) -> (i32, i32, i32) {
    %c0_i32 = arith.constant 0 : i32
    %c0_i32_0 = arith.constant 0 : i32
    %c0_i32_1 = arith.constant 0 : i32
    return %arg0, %c0_i32, %c0_i32_0 : i32, i32, i32
  }
}

</mosaic_0001>

<llo_original>
// kernel: tpu_custom_call.1
$region0: #{tpu_custom_call.1}
  #allocation0 [shape = 'u32[]', space=smem, size = 0x4, offset = 0x4, fixed_abs, tag = 'smem constant byte address 0x4 - core index']
  #allocation1 [shape = 'u32[144,128]{1,0:T(1,128)}', space=vmem, size = 0x12000, scoped, tag = 'internal scratch']
  %s0 = inlined_call_operand.vmem [shape: f32[2,16,4], index: 0, kind: input, shape index: {}]
  %s1 = inlined_call_operand.vmem [shape: f32[4,32], index: 1, kind: input, shape index: {}]
  %s2 = inlined_call_operand.vmem [shape: f32[1,32], index: 2, kind: input, shape index: {}]
  %s3 = inlined_call_operand.vmem [shape: f32[14,96,32], index: 3, kind: input, shape index: {}]
  %s4 = inlined_call_operand.vmem [shape: f32[14,1,32], index: 4, kind: input, shape index: {}]
  %s5 = inlined_call_operand.vmem [shape: f32[32,128], index: 5, kind: input, shape index: {}]
  %s6 = inlined_call_operand.hbm [shape: f32[2,16,128], index: 6, kind: output, shape index: {}]
  %s7 = sld [smem:[#allocation0]]
  $region34: #{tpu_custom_call.1} parent=0
    _
  %s9 = ssub.s32 1, %s7
  %s10 = scalar_select 0, %s9, %s7
  $region1: #{tpu_custom_call.1} parent=0
    #allocation2 [shape = 'u8[16384]{0}', space=vmem, size = 0x4000, scoped, tag = 'output window, operand 0, single buffered']
    #allocation3 [shape = 's32[1]{0}', space=sflag, size = 0x4, scoped, tag = 'scoped memory for tpu_custom_call.1']
    %11 = vsyncpa [#allocation3], 0
    // Predicated region
    $region2: #{tpu_custom_call.1} parent=1 // pred_check
      _
    $region3: #{tpu_custom_call.1} parent=1 // pred_check_branch
      %13 = sbr.rel (0) target = $region5
    $region4: #{tpu_custom_call.1} parent=1 // pred_region
      _
    $region5: #{tpu_custom_call.1} parent=1 // pred_fallthru
      _
    // Predicated region
    $region6: #{tpu_custom_call.1} parent=1 // pred_check
      _
    $region7: #{tpu_custom_call.1} parent=1 // pred_check_branch
      %15 = sbr.rel (0) target = $region9
    $region8: #{tpu_custom_call.1} parent=1 // pred_region
      _
    $region9: #{tpu_custom_call.1} parent=1 // pred_fallthru
      _
    // Predicated region
    $region10: #{tpu_custom_call.1} parent=1 // pred_check
      _
    $region11: #{tpu_custom_call.1} parent=1 // pred_check_branch
      %17 = sbr.rel (0) target = $region13
    $region12: #{tpu_custom_call.1} parent=1 // pred_region
      _
    $region13: #{tpu_custom_call.1} parent=1 // pred_fallthru
      _
    // Predicated region
    $region14: #{tpu_custom_call.1} parent=1 // pred_check
      _
    $region15: #{tpu_custom_call.1} parent=1 // pred_check_branch
      %19 = sbr.rel (0) target = $region17
    $region16: #{tpu_custom_call.1} parent=1 // pred_region
      _
    $region17: #{tpu_custom_call.1} parent=1 // pred_fallthru
      _
    // Predicated region
    $region18: #{tpu_custom_call.1} parent=1 // pred_check
      _
    $region19: #{tpu_custom_call.1} parent=1 // pred_check_branch
      %21 = sbr.rel (0) target = $region21
    $region20: #{tpu_custom_call.1} parent=1 // pred_region
      _
    $region21: #{tpu_custom_call.1} parent=1 // pred_fallthru
      _
    // Predicated region
    $region22: #{tpu_custom_call.1} parent=1 // pred_check
      _
    $region23: #{tpu_custom_call.1} parent=1 // pred_check_branch
      %23 = sbr.rel (0) target = $region25
    $region24: #{tpu_custom_call.1} parent=1 // pred_region
      _
    $region25: #{tpu_custom_call.1} parent=1 // pred_fallthru
      _
    %v24 = vld [vmem:[%s0] sm:$0xff]
    %v25 = vld [vmem:[%s0 + $0x8] sm:$0xff]
    %v26 = vld [vmem:[%s0 + $0x10] sm:$0xff]
    %v27 = vld [vmem:[%s0 + $0x18] sm:$0xff]
    %v28 = vlaneseq
    %v29 = vshrl.u32 %v28, 7
    %v30 = vadd.s32 %v29, 8
    %v31 = vadd.s32 %v29, 16
    %v32 = vadd.s32 %v29, 24
    %vm33 = vcmp.lt.s32.totalorder %v29, 0
    %v34 = vsub.s32 0, %v29
    %v35 = vsel %vm33, %v34, %v29
    %v36 = vshrl.u32 %v35, 4
    %v37 = vand.u32 %v35, 15
    %v38 = vsub.s32 0, %v37
    %v39 = vsel %vm33, %v38, %v37
    %vm40 = vcmp.lt.s32.totalorder %v30, 0
    %v41 = vsub.s32 0, %v30
    %v42 = vsel %vm40, %v41, %v30
    %v43 = vshrl.u32 %v42, 4
    %v44 = vand.u32 %v42, 15
    %v45 = vsub.s32 0, %v44
    %v46 = vsel %vm40, %v45, %v44
    %vm47 = vcmp.lt.s32.totalorder %v31, 0
    %v48 = vsub.s32 0, %v31
    %v49 = vsel %vm47, %v48, %v31
    %v50 = vshrl.u32 %v49, 4
    %v51 = vand.u32 %v49, 15
    %v52 = vsub.s32 0, %v51
    %v53 = vsel %vm47, %v52, %v51
    %vm54 = vcmp.lt.s32.totalorder %v32, 0
    %v55 = vsub.s32 0, %v32
    %v56 = vsel %vm54, %v55, %v32
    %v57 = vshrl.u32 %v56, 4
    %v58 = vand.u32 %v56, 15
    %v59 = vsub.s32 0, %v58
    %v60 = vsel %vm54, %v59, %v58
    %vm61 = vcmp.ne.s32.totalorder %v39, 0
    %vm62 = vcmp.ne.s32.totalorder %v46, 0
    %vm63 = vcmp.ne.s32.totalorder %v53, 0
    %vm64 = vcmp.ne.s32.totalorder %v60, 0
    %vm65 = vcmp.lt.s32.totalorder %v39, 0
    %vm66 = vcmp.lt.s32.totalorder %v46, 0
    %vm67 = vcmp.lt.s32.totalorder %v53, 0
    %vm68 = vcmp.lt.s32.totalorder %v60, 0
    %vm69 = vmand %vm65, %vm61
    %vm70 = vmand %vm66, %vm62
    %vm71 = vmand %vm67, %vm63
    %vm72 = vmand %vm68, %vm64
    %v73 = vadd.s32 %v39, 16
    %v74 = vadd.s32 %v46, 16
    %v75 = vadd.s32 %v53, 16
    %v76 = vadd.s32 %v60, 16
    %v77 = vsel %vm69, %v73, %v39
    %v78 = vsel %vm70, %v74, %v46
    %v79 = vsel %vm71, %v75, %v53
    %v80 = vsel %vm72, %v76, %v60
    %vm81 = vcmp.ge.s32.totalorder %v77, 1
    %vm82 = vcmp.ge.s32.totalorder %v78, 1
    %vm83 = vcmp.ge.s32.totalorder %v79, 1
    %vm84 = vcmp.ge.s32.totalorder %v80, 1
    %vm85 = vcmp.lt.s32.totalorder %v77, 15
    %vm86 = vcmp.lt.s32.totalorder %v78, 15
    %vm87 = vcmp.lt.s32.totalorder %v79, 15
    %vm88 = vcmp.lt.s32.totalorder %v80, 15
    %vm89 = vcmp.ge.s32.totalorder %v77, 2
    %vm90 = vcmp.ge.s32.totalorder %v78, 2
    %vm91 = vcmp.ge.s32.totalorder %v79, 2
    %vm92 = vcmp.ge.s32.totalorder %v80, 2
    %vm93 = vcmp.lt.s32.totalorder %v77, 14
    %vm94 = vcmp.lt.s32.totalorder %v78, 14
    %vm95 = vcmp.lt.s32.totalorder %v79, 14
    %vm96 = vcmp.lt.s32.totalorder %v80, 14
    %vm97 = vcmp.ge.s32.totalorder %v77, 4
    %vm98 = vcmp.ge.s32.totalorder %v78, 4
    %vm99 = vcmp.ge.s32.totalorder %v79, 4
    %vm100 = vcmp.ge.s32.totalorder %v80, 4
    %vm101 = vcmp.lt.s32.totalorder %v77, 12
    %vm102 = vcmp.lt.s32.totalorder %v78, 12
    %vm103 = vcmp.lt.s32.totalorder %v79, 12
    %vm104 = vcmp.lt.s32.totalorder %v80, 12
    %vm105 = vcmp.ge.s32.totalorder %v77, 8
    %vm106 = vcmp.ge.s32.totalorder %v78, 8
    %vm107 = vcmp.ge.s32.totalorder %v79, 8
    %vm108 = vcmp.ge.s32.totalorder %v80, 8
    %vm109 = vcmp.lt.s32.totalorder %v77, 8
    %vm110 = vcmp.lt.s32.totalorder %v78, 8
    %vm111 = vcmp.lt.s32.totalorder %v79, 8
    %vm112 = vcmp.lt.s32.totalorder %v80, 8
    %v113 = vld [vmem:[%s1] sm:$0xf]
    %v114 = vld [vmem:[%s2] sm:$0x1]
    %v116 = vlaneseq
    %v117 = vshrl.u32 %v116, 7
    %v118 = vsub.s32 0, %v117
    %v119 = vrot.slane %v114, %v118
    %vm121 = vcmask 31744
    %v123 = vsel %vm121, %v24, 0
    %v126 = vsel %vm121, %v25, 0
    %v129 = vsel %vm121, %v26, 0
    %v132 = vsel %vm121, %v27, 0
    %vm134 = vcmask 1043456
    %v136 = vsel %vm134, %v113, 0
    %138 = vmatprep.subr.mxu0 0.0
    %139 = vmatpush1.msra.mxu0 0.0
    %140 = vmatprep.subr.mxu0 0.0
    %141 = vmatpush1.msra.mxu0 0.0
    %142 = vmatprep.subr.mxu0 0.0
    %143 = vmatpush1.msra.mxu0 0.0
    %144 = vmatprep.subr.mxu0 0.0
    %145 = vmatpush1.msra.mxu0 0.0
    %146 = vmatprep.subr.mxu0 0.0
    %147 = vmatpush1.msra.mxu0 0.0
    %148 = vmatprep.subr.mxu0 0.0
    %149 = vmatpush1.msra.mxu0 0.0
    %150 = vmatprep.subr.mxu0 0.0
    %151 = vmatpush1.msra.mxu0 0.0
    %152 = vmatprep.subr.mxu0 0.0
    %153 = vmatpush1.msra.mxu0 0.0
    %154 = vmatprep.subr.mxu0 0.0
    %155 = vmatpush1.msra.mxu0 0.0
    %156 = vmatprep.subr.mxu0 0.0
    %157 = vmatpush1.msra.mxu0 0.0
    %158 = vmatprep.subr.mxu0 0.0
    %159 = vmatpush1.msra.mxu0 0.0
    %160 = vmatprep.subr.mxu0 0.0
    %161 = vmatpush1.msra.mxu0 0.0
    %162 = vmatprep.subr.mxu0 0.0
    %163 = vmatpush1.msra.mxu0 0.0
    %164 = vmatprep.subr.mxu0 0.0
    %165 = vmatpush1.msra.mxu0 0.0
    %166 = vmatprep.subr.mxu0 0.0
    %167 = vmatpush1.msra.mxu0 0.0
    %168 = vmatprep.subr.mxu0 0.0
    %169 = vmatpush1.msra.mxu0 %v136
    %170 = vmatprep.subr.mxu0 0.0
    %171 = vmatpush2.msra.mxu0 0.0
    %172 = vmatprep.subr.mxu0 0.0
    %173 = vmatpush2.msra.mxu0 0.0
    %174 = vmatprep.subr.mxu0 0.0
    %175 = vmatpush2.msra.mxu0 0.0
    %176 = vmatprep.subr.mxu0 0.0
    %177 = vmatpush2.msra.mxu0 0.0
    %178 = vmatprep.subr.mxu0 0.0
    %179 = vmatpush2.msra.mxu0 0.0
    %180 = vmatprep.subr.mxu0 0.0
    %181 = vmatpush2.msra.mxu0 0.0
    %182 = vmatprep.subr.mxu0 0.0
    %183 = vmatpush2.msra.mxu0 0.0
    %184 = vmatprep.subr.mxu0 0.0
    %185 = vmatpush2.msra.mxu0 0.0
    %186 = vmatprep.subr.mxu0 0.0
    %187 = vmatpush2.msra.mxu0 0.0
    %188 = vmatprep.subr.mxu0 0.0
    %189 = vmatpush2.msra.mxu0 0.0
    %190 = vmatprep.subr.mxu0 0.0
    %191 = vmatpush2.msra.mxu0 0.0
    %192 = vmatprep.subr.mxu0 0.0
    %193 = vmatpush2.msra.mxu0 0.0
    %194 = vmatprep.subr.mxu0 0.0
    %195 = vmatpush2.msra.mxu0 0.0
    %196 = vmatprep.subr.mxu0 0.0
    %197 = vmatpush2.msra.mxu0 0.0
    %198 = vmatprep.subr.mxu0 0.0
    %199 = vmatpush2.msra.mxu0 0.0
    %200 = vmatprep.subr.mxu0 0.0
    %201 = vmatpush2.msra.mxu0 0.0
    %202 = vmatprep.mubr.f32.mxu0 0.0
    %203 = vmatmul.mubr.f32.gmra.mxu0 %v123
    %v204 = vpop.f32.mrf.mxu0
    %v205 = vadd.f32 %v119, %v204
    %v206 = vpop.f32.mrf.mxu0
    %207 = vmatprep.mubr.f32.mxu0 0.0
    %208 = vmatmul.mubr.f32.gmra.mxu0 %v126
    %v209 = vpop.f32.mrf.mxu0
    %v210 = vadd.f32 %v119, %v209
    %v211 = vpop.f32.mrf.mxu0
    %212 = vmatprep.mubr.f32.mxu0 0.0
    %213 = vmatmul.mubr.f32.gmra.mxu0 %v129
    %v214 = vpop.f32.mrf.mxu0
    %v215 = vadd.f32 %v119, %v214
    %v216 = vpop.f32.mrf.mxu0
    %217 = vmatprep.mubr.f32.mxu0 0.0
    %218 = vmatmul.mubr.f32.gmra.mxu0 %v132
    %v219 = vpop.f32.mrf.mxu0
    %v220 = vadd.f32 %v119, %v219
    %v221 = vpop.f32.mrf.mxu0
    %222 = vdwg.mxu0
    %v223 = vmax.f32 %v205, 0.0
    %v224 = vmax.f32 %v210, 0.0
    %v225 = vmax.f32 %v215, 0.0
    %v226 = vmax.f32 %v220, 0.0
    %v227 = vld [vmem:[%s3] sm:$0xff]
    %v228 = vld [vmem:[%s3 + $0x8] sm:$0xff]
    %v229 = vld [vmem:[%s3 + $0x10] sm:$0xff]
    %v230 = vld [vmem:[%s3 + $0x18] sm:$0xff]
    %v231 = vld [vmem:[%s3 + $0x20] sm:$0xff]
    %v232 = vld [vmem:[%s3 + $0x28] sm:$0xff]
    %v233 = vld [vmem:[%s3 + $0x30] sm:$0xff]
    %v234 = vld [vmem:[%s3 + $0x38] sm:$0xff]
    %v235 = vld [vmem:[%s3 + $0x40] sm:$0xff]
    %v236 = vld [vmem:[%s3 + $0x48] sm:$0xff]
    %v237 = vld [vmem:[%s3 + $0x50] sm:$0xff]
    %v238 = vld [vmem:[%s3 + $0x58] sm:$0xff]
    %v240 = vrot.slane %v226, 7
    %vm245 = vcmask 1040384
    %v246 = vrot.slane %v223, 7
    %v247 = vrot.slane %v224, 7
    %v248 = vsel %vm245, %v246, %v247
    %v249 = vrot.slane %v225, 7
    %v250 = vsel %vm245, %v247, %v249
    %v251 = vsel %vm245, %v249, %v240
    %v256 = vsel %vm245, %v240, %v246
    %v257 = vsel %vm81, %v256, 0.0
    %v258 = vsel %vm82, %v248, 0.0
    %v259 = vsel %vm83, %v250, 0.0
    %v260 = vsel %vm84, %v251, 0.0
    %vm261 = vcmask 1046528
    %v262 = vrot.slane %v223, 1
    %v263 = vrot.slane %v224, 1
    %v264 = vsel %vm261, %v262, %v263
    %v265 = vrot.slane %v225, 1
    %v266 = vsel %vm261, %v263, %v265
    %v267 = vrot.slane %v226, 1
    %v268 = vsel %vm261, %v265, %v267
    %v274 = vsel %vm261, %v267, %v262
    %v275 = vsel %vm85, %v264, 0.0
    %v276 = vsel %vm86, %v266, 0.0
    %v277 = vsel %vm87, %v268, 0.0
    %v278 = vsel %vm88, %v274, 0.0
    %279 = vrot.lane.b32.xlu0 %v223, 32
    %v280 = vpop.permute.xlu0 %279
    %281 = vrot.lane.b32.xlu0 %v224, 32
    %v282 = vpop.permute.xlu0 %281
    %283 = vrot.lane.b32.xlu0 %v225, 32
    %v284 = vpop.permute.xlu0 %283
    %285 = vrot.lane.b32.xlu0 %v226, 32
    %v286 = vpop.permute.xlu0 %285
    %295 = vrot.lane.b32.xlu0 %v275, 64
    %v296 = vpop.permute.xlu0 %295
    %297 = vrot.lane.b32.xlu0 %v276, 64
    %v298 = vpop.permute.xlu0 %297
    %299 = vrot.lane.b32.xlu0 %v277, 64
    %v300 = vpop.permute.xlu0 %299
    %301 = vrot.lane.b32.xlu0 %v278, 64
    %v302 = vpop.permute.xlu0 %301
    %vm307 = vcmask 261120
    %v308 = vsel %vm307, %v257, %v280
    %v309 = vsel %vm307, %v258, %v282
    %v310 = vsel %vm307, %v259, %v284
    %v311 = vsel %vm307, %v260, %v286
    %vm312 = vcmask 523264
    %v313 = vsel %vm312, %v308, %v296
    %v314 = vsel %vm312, %v309, %v298
    %v315 = vsel %vm312, %v310, %v300
    %v316 = vsel %vm312, %v311, %v302
    %v317 = vld [vmem:[%s4] sm:$0x1]
    %v319 = vlaneseq
    %v320 = vshrl.u32 %v319, 7
    %v321 = vsub.s32 0, %v320
    %v322 = vrot.slane %v317, %v321
    %vm324 = vcmask 785408
    %v326 = vsel %vm324, %v313, 0
    %v329 = vsel %vm324, %v314, 0
    %v332 = vsel %vm324, %v315, 0
    %v335 = vsel %vm324, %v316, 0
    %337 = vmatprep.subr.mxu0 0.0
    %338 = vmatpush1.msra.mxu0 0.0
    %339 = vmatprep.subr.mxu0 0.0
    %340 = vmatpush1.msra.mxu0 0.0
    %341 = vmatprep.subr.mxu0 0.0
    %342 = vmatpush1.msra.mxu0 0.0
    %343 = vmatprep.subr.mxu0 0.0
    %344 = vmatpush1.msra.mxu0 0.0
    %345 = vmatprep.subr.mxu0 0.0
    %346 = vmatpush1.msra.mxu0 %v238
    %347 = vmatprep.subr.mxu0 0.0
    %348 = vmatpush1.msra.mxu0 %v237
    %349 = vmatprep.subr.mxu0 0.0
    %350 = vmatpush1.msra.mxu0 %v236
    %351 = vmatprep.subr.mxu0 0.0
    %352 = vmatpush1.msra.mxu0 %v235
    %353 = vmatprep.subr.mxu0 0.0
    %354 = vmatpush1.msra.mxu0 %v234
    %355 = vmatprep.subr.mxu0 0.0
    %356 = vmatpush1.msra.mxu0 %v233
    %357 = vmatprep.subr.mxu0 0.0
    %358 = vmatpush1.msra.mxu0 %v232
    %359 = vmatprep.subr.mxu0 0.0
    %360 = vmatpush1.msra.mxu0 %v231
    %361 = vmatprep.subr.mxu0 0.0
    %362 = vmatpush1.msra.mxu0 %v230
    %363 = vmatprep.subr.mxu0 0.0
    %364 = vmatpush1.msra.mxu0 %v229
    %365 = vmatprep.subr.mxu0 0.0
    %366 = vmatpush1.msra.mxu0 %v228
    %367 = vmatprep.subr.mxu0 0.0
    %368 = vmatpush1.msra.mxu0 %v227
    %369 = vmatprep.subr.mxu0 0.0
    %370 = vmatpush2.msra.mxu0 0.0
    %371 = vmatprep.subr.mxu0 0.0
    %372 = vmatpush2.msra.mxu0 0.0
    %373 = vmatprep.subr.mxu0 0.0
    %374 = vmatpush2.msra.mxu0 0.0
    %375 = vmatprep.subr.mxu0 0.0
    %376 = vmatpush2.msra.mxu0 0.0
    %377 = vmatprep.subr.mxu0 0.0
    %378 = vmatpush2.msra.mxu0 0.0
    %379 = vmatprep.subr.mxu0 0.0
    %380 = vmatpush2.msra.mxu0 0.0
    %381 = vmatprep.subr.mxu0 0.0
    %382 = vmatpush2.msra.mxu0 0.0
    %383 = vmatprep.subr.mxu0 0.0
    %384 = vmatpush2.msra.mxu0 0.0
    %385 = vmatprep.subr.mxu0 0.0
    %386 = vmatpush2.msra.mxu0 0.0
    %387 = vmatprep.subr.mxu0 0.0
    %388 = vmatpush2.msra.mxu0 0.0
    %389 = vmatprep.subr.mxu0 0.0
    %390 = vmatpush2.msra.mxu0 0.0
    %391 = vmatprep.subr.mxu0 0.0
    %392 = vmatpush2.msra.mxu0 0.0
    %393 = vmatprep.subr.mxu0 0.0
    %394 = vmatpush2.msra.mxu0 0.0
    %395 = vmatprep.subr.mxu0 0.0
    %396 = vmatpush2.msra.mxu0 0.0
    %397 = vmatprep.subr.mxu0 0.0
    %398 = vmatpush2.msra.mxu0 0.0
    %399 = vmatprep.subr.mxu0 0.0
    %400 = vmatpush2.msra.mxu0 0.0
    %401 = vmatprep.mubr.f32.mxu0 0.0
    %402 = vmatmul.mubr.f32.gmra.mxu0 %v326
    %v403 = vpop.f32.mrf.mxu0
    %v404 = vadd.f32 %v322, %v403
    %v405 = vpop.f32.mrf.mxu0
    %406 = vmatprep.mubr.f32.mxu0 0.0
    %407 = vmatmul.mubr.f32.gmra.mxu0 %v329
    %v408 = vpop.f32.mrf.mxu0
    %v409 = vadd.f32 %v322, %v408
    %v410 = vpop.f32.mrf.mxu0
    %411 = vmatprep.mubr.f32.mxu0 0.0
    %412 = vmatmul.mubr.f32.gmra.mxu0 %v332
    %v413 = vpop.f32.mrf.mxu0
    %v414 = vadd.f32 %v322, %v413
    %v415 = vpop.f32.mrf.mxu0
    %416 = vmatprep.mubr.f32.mxu0 0.0
    %417 = vmatmul.mubr.f32.gmra.mxu0 %v335
    %v418 = vpop.f32.mrf.mxu0
    %v419 = vadd.f32 %v322, %v418
    %v420 = vpop.f32.mrf.mxu0
    %421 = vdwg.mxu0
    %v422 = vmax.f32 %v404, 0.0
    %v423 = vmax.f32 %v409, 0.0
    %v424 = vmax.f32 %v414, 0.0
    %v425 = vmax.f32 %v419, 0.0
    %s426 = scalar_lea.vmem %s3, 96
    %v427 = vld [vmem:[%s426] sm:$0xff]
    %v428 = vld [vmem:[%s426 + $0x8] sm:$0xff]
    %v429 = vld [vmem:[%s426 + $0x10] sm:$0xff]
    %v430 = vld [vmem:[%s426 + $0x18] sm:$0xff]
    %v431 = vld [vmem:[%s426 + $0x20] sm:$0xff]
    %v432 = vld [vmem:[%s426 + $0x28] sm:$0xff]
    %v433 = vld [vmem:[%s426 + $0x30] sm:$0xff]
    %v434 = vld [vmem:[%s426 + $0x38] sm:$0xff]
    %v435 = vld [vmem:[%s426 + $0x40] sm:$0xff]
    %v436 = vld [vmem:[%s426 + $0x48] sm:$0xff]
    %v437 = vld [vmem:[%s426 + $0x50] sm:$0xff]
    %v438 = vld [vmem:[%s426 + $0x58] sm:$0xff]
    %v440 = vrot.slane %v425, 6
    %vm445 = vcmask 1041408
    %v446 = vrot.slane %v422, 6
    %v447 = vrot.slane %v423, 6
    %v448 = vsel %vm445, %v446, %v447
    %v449 = vrot.slane %v424, 6
    %v450 = vsel %vm445, %v447, %v449
    %v451 = vsel %vm445, %v449, %v440
    %v456 = vsel %vm445, %v440, %v446
    %v457 = vsel %vm89, %v456, 0.0
    %v458 = vsel %vm90, %v448, 0.0
    %v459 = vsel %vm91, %v450, 0.0
    %v460 = vsel %vm92, %v451, 0.0
    %vm461 = vcmask 1045504
    %v462 = vrot.slane %v422, 2
    %v463 = vrot.slane %v423, 2
    %v464 = vsel %vm461, %v462, %v463
    %v465 = vrot.slane %v424, 2
    %v466 = vsel %vm461, %v463, %v465
    %v467 = vrot.slane %v425, 2
    %v468 = vsel %vm461, %v465, %v467
    %v474 = vsel %vm461, %v467, %v462
    %v475 = vsel %vm93, %v464, 0.0
    %v476 = vsel %vm94, %v466, 0.0
    %v477 = vsel %vm95, %v468, 0.0
    %v478 = vsel %vm96, %v474, 0.0
    %479 = vrot.lane.b32.xlu0 %v422, 32
    %v480 = vpop.permute.xlu0 %479
    %481 = vrot.lane.b32.xlu0 %v423, 32
    %v482 = vpop.permute.xlu0 %481
    %483 = vrot.lane.b32.xlu0 %v424, 32
    %v484 = vpop.permute.xlu0 %483
    %485 = vrot.lane.b32.xlu0 %v425, 32
    %v486 = vpop.permute.xlu0 %485
    %495 = vrot.lane.b32.xlu0 %v475, 64
    %v496 = vpop.permute.xlu0 %495
    %497 = vrot.lane.b32.xlu0 %v476, 64
    %v498 = vpop.permute.xlu0 %497
    %499 = vrot.lane.b32.xlu0 %v477, 64
    %v500 = vpop.permute.xlu0 %499
    %501 = vrot.lane.b32.xlu0 %v478, 64
    %v502 = vpop.permute.xlu0 %501
    %v507 = vsel %vm307, %v457, %v480
    %v508 = vsel %vm307, %v458, %v482
    %v509 = vsel %vm307, %v459, %v484
    %v510 = vsel %vm307, %v460, %v486
    %v511 = vsel %vm312, %v507, %v496
    %v512 = vsel %vm312, %v508, %v498
    %v513 = vsel %vm312, %v509, %v500
    %v514 = vsel %vm312, %v510, %v502
    %s515 = scalar_lea.vmem %s4, 1
    %v516 = vld [vmem:[%s515] sm:$0x1]
    %v518 = vlaneseq
    %v519 = vshrl.u32 %v518, 7
    %v520 = vsub.s32 0, %v519
    %v521 = vrot.slane %v516, %v520
    %v524 = vsel %vm324, %v511, 0
    %v527 = vsel %vm324, %v512, 0
    %v530 = vsel %vm324, %v513, 0
    %v533 = vsel %vm324, %v514, 0
    %535 = vmatprep.subr.mxu0 0.0
    %536 = vmatpush1.msra.mxu0 0.0
    %537 = vmatprep.subr.mxu0 0.0
    %538 = vmatpush1.msra.mxu0 0.0
    %539 = vmatprep.subr.mxu0 0.0
    %540 = vmatpush1.msra.mxu0 0.0
    %541 = vmatprep.subr.mxu0 0.0
    %542 = vmatpush1.msra.mxu0 0.0
    %543 = vmatprep.subr.mxu0 0.0
    %544 = vmatpush1.msra.mxu0 %v438
    %545 = vmatprep.subr.mxu0 0.0
    %546 = vmatpush1.msra.mxu0 %v437
    %547 = vmatprep.subr.mxu0 0.0
    %548 = vmatpush1.msra.mxu0 %v436
    %549 = vmatprep.subr.mxu0 0.0
    %550 = vmatpush1.msra.mxu0 %v435
    %551 = vmatprep.subr.mxu0 0.0
    %552 = vmatpush1.msra.mxu0 %v434
    %553 = vmatprep.subr.mxu0 0.0
    %554 = vmatpush1.msra.mxu0 %v433
    %555 = vmatprep.subr.mxu0 0.0
    %556 = vmatpush1.msra.mxu0 %v432
    %557 = vmatprep.subr.mxu0 0.0
    %558 = vmatpush1.msra.mxu0 %v431
    %559 = vmatprep.subr.mxu0 0.0
    %560 = vmatpush1.msra.mxu0 %v430
    %561 = vmatprep.subr.mxu0 0.0
    %562 = vmatpush1.msra.mxu0 %v429
    %563 = vmatprep.subr.mxu0 0.0
    %564 = vmatpush1.msra.mxu0 %v428
    %565 = vmatprep.subr.mxu0 0.0
    %566 = vmatpush1.msra.mxu0 %v427
    %567 = vmatprep.subr.mxu0 0.0
    %568 = vmatpush2.msra.mxu0 0.0
    %569 = vmatprep.subr.mxu0 0.0
    %570 = vmatpush2.msra.mxu0 0.0
    %571 = vmatprep.subr.mxu0 0.0
    %572 = vmatpush2.msra.mxu0 0.0
    %573 = vmatprep.subr.mxu0 0.0
    %574 = vmatpush2.msra.mxu0 0.0
    %575 = vmatprep.subr.mxu0 0.0
    %576 = vmatpush2.msra.mxu0 0.0
    %577 = vmatprep.subr.mxu0 0.0
    %578 = vmatpush2.msra.mxu0 0.0
    %579 = vmatprep.subr.mxu0 0.0
    %580 = vmatpush2.msra.mxu0 0.0
    %581 = vmatprep.subr.mxu0 0.0
    %582 = vmatpush2.msra.mxu0 0.0
    %583 = vmatprep.subr.mxu0 0.0
    %584 = vmatpush2.msra.mxu0 0.0
    %585 = vmatprep.subr.mxu0 0.0
    %586 = vmatpush2.msra.mxu0 0.0
    %587 = vmatprep.subr.mxu0 0.0
    %588 = vmatpush2.msra.mxu0 0.0
    %589 = vmatprep.subr.mxu0 0.0
    %590 = vmatpush2.msra.mxu0 0.0
    %591 = vmatprep.subr.mxu0 0.0
    %592 = vmatpush2.msra.mxu0 0.0
    %593 = vmatprep.subr.mxu0 0.0
    %594 = vmatpush2.msra.mxu0 0.0
    %595 = vmatprep.subr.mxu0 0.0
    %596 = vmatpush2.msra.mxu0 0.0
    %597 = vmatprep.subr.mxu0 0.0
    %598 = vmatpush2.msra.mxu0 0.0
    %599 = vmatprep.mubr.f32.mxu0 0.0
    %600 = vmatmul.mubr.f32.gmra.mxu0 %v524
    %v601 = vpop.f32.mrf.mxu0
    %v602 = vadd.f32 %v521, %v601
    %v603 = vpop.f32.mrf.mxu0
    %604 = vmatprep.mubr.f32.mxu0 0.0
    %605 = vmatmul.mubr.f32.gmra.mxu0 %v527
    %v606 = vpop.f32.mrf.mxu0
    %v607 = vadd.f32 %v521, %v606
    %v608 = vpop.f32.mrf.mxu0
    %609 = vmatprep.mubr.f32.mxu0 0.0
    %610 = vmatmul.mubr.f32.gmra.mxu0 %v530
    %v611 = vpop.f32.mrf.mxu0
    %v612 = vadd.f32 %v521, %v611
    %v613 = vpop.f32.mrf.mxu0
    %614 = vmatprep.mubr.f32.mxu0 0.0
    %615 = vmatmul.mubr.f32.gmra.mxu0 %v533
    %v616 = vpop.f32.mrf.mxu0
    %v617 = vadd.f32 %v521, %v616
    %v618 = vpop.f32.mrf.mxu0
    %619 = vdwg.mxu0
    %v620 = vmax.f32 %v602, 0.0
    %v621 = vmax.f32 %v607, 0.0
    %v622 = vmax.f32 %v612, 0.0
    %v623 = vmax.f32 %v617, 0.0
    %s624 = scalar_lea.vmem %s3, 192
    %v625 = vld [vmem:[%s624] sm:$0xff]
    %v626 = vld [vmem:[%s624 + $0x8] sm:$0xff]
    %v627 = vld [vmem:[%s624 + $0x10] sm:$0xff]
    %v628 = vld [vmem:[%s624 + $0x18] sm:$0xff]
    %v629 = vld [vmem:[%s624 + $0x20] sm:$0xff]
    %v630 = vld [vmem:[%s624 + $0x28] sm:$0xff]
    %v631 = vld [vmem:[%s624 + $0x30] sm:$0xff]
    %v632 = vld [vmem:[%s624 + $0x38] sm:$0xff]
    %v633 = vld [vmem:[%s624 + $0x40] sm:$0xff]
    %v634 = vld [vmem:[%s624 + $0x48] sm:$0xff]
    %v635 = vld [vmem:[%s624 + $0x50] sm:$0xff]
    %v636 = vld [vmem:[%s624 + $0x58] sm:$0xff]
    %v638 = vrot.slane %v623, 4
    %v643 = vrot.slane %v620, 4
    %v644 = vrot.slane %v621, 4
    %v645 = vsel %vm134, %v643, %v644
    %v646 = vrot.slane %v622, 4
    %v647 = vsel %vm134, %v644, %v646
    %v648 = vsel %vm134, %v646, %v638
    %v653 = vsel %vm134, %v638, %v643
    %v654 = vsel %vm97, %v653, 0.0
    %v655 = vsel %vm98, %v645, 0.0
    %v656 = vsel %vm99, %v647, 0.0
    %v657 = vsel %vm100, %v648, 0.0
    %v658 = vsel %vm101, %v645, 0.0
    %v659 = vsel %vm102, %v647, 0.0
    %v660 = vsel %vm103, %v648, 0.0
    %v661 = vsel %vm104, %v653, 0.0
    %662 = vrot.lane.b32.xlu0 %v620, 32
    %v663 = vpop.permute.xlu0 %662
    %664 = vrot.lane.b32.xlu0 %v621, 32
    %v665 = vpop.permute.xlu0 %664
    %666 = vrot.lane.b32.xlu0 %v622, 32
    %v667 = vpop.permute.xlu0 %666
    %668 = vrot.lane.b32.xlu0 %v623, 32
    %v669 = vpop.permute.xlu0 %668
    %678 = vrot.lane.b32.xlu0 %v658, 64
    %v679 = vpop.permute.xlu0 %678
    %680 = vrot.lane.b32.xlu0 %v659, 64
    %v681 = vpop.permute.xlu0 %680
    %682 = vrot.lane.b32.xlu0 %v660, 64
    %v683 = vpop.permute.xlu0 %682
    %684 = vrot.lane.b32.xlu0 %v661, 64
    %v685 = vpop.permute.xlu0 %684
    %v690 = vsel %vm307, %v654, %v663
    %v691 = vsel %vm307, %v655, %v665
    %v692 = vsel %vm307, %v656, %v667
    %v693 = vsel %vm307, %v657, %v669
    %v694 = vsel %vm312, %v690, %v679
    %v695 = vsel %vm312, %v691, %v681
    %v696 = vsel %vm312, %v692, %v683
    %v697 = vsel %vm312, %v693, %v685
    %s698 = scalar_lea.vmem %s4, 2
    %v699 = vld [vmem:[%s698] sm:$0x1]
    %v701 = vlaneseq
    %v702 = vshrl.u32 %v701, 7
    %v703 = vsub.s32 0, %v702
    %v704 = vrot.slane %v699, %v703
    %v707 = vsel %vm324, %v694, 0
    %v710 = vsel %vm324, %v695, 0
    %v713 = vsel %vm324, %v696, 0
    %v716 = vsel %vm324, %v697, 0
    %718 = vmatprep.subr.mxu0 0.0
    %719 = vmatpush1.msra.mxu0 0.0
    %720 = vmatprep.subr.mxu0 0.0
    %721 = vmatpush1.msra.mxu0 0.0
    %722 = vmatprep.subr.mxu0 0.0
    %723 = vmatpush1.msra.mxu0 0.0
    %724 = vmatprep.subr.mxu0 0.0
    %725 = vmatpush1.msra.mxu0 0.0
    %726 = vmatprep.subr.mxu0 0.0
    %727 = vmatpush1.msra.mxu0 %v636
    %728 = vmatprep.subr.mxu0 0.0
    %729 = vmatpush1.msra.mxu0 %v635
    %730 = vmatprep.subr.mxu0 0.0
    %731 = vmatpush1.msra.mxu0 %v634
    %732 = vmatprep.subr.mxu0 0.0
    %733 = vmatpush1.msra.mxu0 %v633
    %734 = vmatprep.subr.mxu0 0.0
    %735 = vmatpush1.msra.mxu0 %v632
    %736 = vmatprep.subr.mxu0 0.0
    %737 = vmatpush1.msra.mxu0 %v631
    %738 = vmatprep.subr.mxu0 0.0
    %739 = vmatpush1.msra.mxu0 %v630
    %740 = vmatprep.subr.mxu0 0.0
    %741 = vmatpush1.msra.mxu0 %v629
    %742 = vmatprep.subr.mxu0 0.0
    %743 = vmatpush1.msra.mxu0 %v628
    %744 = vmatprep.subr.mxu0 0.0
    %745 = vmatpush1.msra.mxu0 %v627
    %746 = vmatprep.subr.mxu0 0.0
    %747 = vmatpush1.msra.mxu0 %v626
    %748 = vmatprep.subr.mxu0 0.0
    %749 = vmatpush1.msra.mxu0 %v625
    %750 = vmatprep.subr.mxu0 0.0
    %751 = vmatpush2.msra.mxu0 0.0
    %752 = vmatprep.subr.mxu0 0.0
    %753 = vmatpush2.msra.mxu0 0.0
    %754 = vmatprep.subr.mxu0 0.0
    %755 = vmatpush2.msra.mxu0 0.0
    %756 = vmatprep.subr.mxu0 0.0
    %757 = vmatpush2.msra.mxu0 0.0
    %758 = vmatprep.subr.mxu0 0.0
    %759 = vmatpush2.msra.mxu0 0.0
    %760 = vmatprep.subr.mxu0 0.0
    %761 = vmatpush2.msra.mxu0 0.0
    %762 = vmatprep.subr.mxu0 0.0
    %763 = vmatpush2.msra.mxu0 0.0
    %764 = vmatprep.subr.mxu0 0.0
    %765 = vmatpush2.msra.mxu0 0.0
    %766 = vmatprep.subr.mxu0 0.0
    %767 = vmatpush2.msra.mxu0 0.0
    %768 = vmatprep.subr.mxu0 0.0
    %769 = vmatpush2.msra.mxu0 0.0
    %770 = vmatprep.subr.mxu0 0.0
    %771 = vmatpush2.msra.mxu0 0.0
    %772 = vmatprep.subr.mxu0 0.0
    %773 = vmatpush2.msra.mxu0 0.0
    %774 = vmatprep.subr.mxu0 0.0
    %775 = vmatpush2.msra.mxu0 0.0
    %776 = vmatprep.subr.mxu0 0.0
    %777 = vmatpush2.msra.mxu0 0.0
    %778 = vmatprep.subr.mxu0 0.0
    %779 = vmatpush2.msra.mxu0 0.0
    %780 = vmatprep.subr.mxu0 0.0
    %781 = vmatpush2.msra.mxu0 0.0
    %782 = vmatprep.mubr.f32.mxu0 0.0
    %783 = vmatmul.mubr.f32.gmra.mxu0 %v707
    %v784 = vpop.f32.mrf.mxu0
    %v785 = vadd.f32 %v704, %v784
    %v786 = vpop.f32.mrf.mxu0
    %787 = vmatprep.mubr.f32.mxu0 0.0
    %788 = vmatmul.mubr.f32.gmra.mxu0 %v710
    %v789 = vpop.f32.mrf.mxu0
    %v790 = vadd.f32 %v704, %v789
    %v791 = vpop.f32.mrf.mxu0
    %792 = vmatprep.mubr.f32.mxu0 0.0
    %793 = vmatmul.mubr.f32.gmra.mxu0 %v713
    %v794 = vpop.f32.mrf.mxu0
    %v795 = vadd.f32 %v704, %v794
    %v796 = vpop.f32.mrf.mxu0
    %797 = vmatprep.mubr.f32.mxu0 0.0
    %798 = vmatmul.mubr.f32.gmra.mxu0 %v716
    %v799 = vpop.f32.mrf.mxu0
    %v800 = vadd.f32 %v704, %v799
    %v801 = vpop.f32.mrf.mxu0
    %802 = vdwg.mxu0
    %v803 = vmax.f32 %v785, 0.0
    %v804 = vmax.f32 %v790, 0.0
    %v805 = vmax.f32 %v795, 0.0
    %v806 = vmax.f32 %v800, 0.0
    %s807 = scalar_lea.vmem %s3, 288
    %v808 = vld [vmem:[%s807] sm:$0xff]
    %v809 = vld [vmem:[%s807 + $0x8] sm:$0xff]
    %v810 = vld [vmem:[%s807 + $0x10] sm:$0xff]
    %v811 = vld [vmem:[%s807 + $0x18] sm:$0xff]
    %v812 = vld [vmem:[%s807 + $0x20] sm:$0xff]
    %v813 = vld [vmem:[%s807 + $0x28] sm:$0xff]
    %v814 = vld [vmem:[%s807 + $0x30] sm:$0xff]
    %v815 = vld [vmem:[%s807 + $0x38] sm:$0xff]
    %v816 = vld [vmem:[%s807 + $0x40] sm:$0xff]
    %v817 = vld [vmem:[%s807 + $0x48] sm:$0xff]
    %v818 = vld [vmem:[%s807 + $0x50] sm:$0xff]
    %v819 = vld [vmem:[%s807 + $0x58] sm:$0xff]
    %v820 = vsel %vm105, %v806, 0.0
    %v821 = vsel %vm106, %v803, 0.0
    %v822 = vsel %vm107, %v804, 0.0
    %v823 = vsel %vm108, %v805, 0.0
    %v824 = vsel %vm109, %v804, 0.0
    %v825 = vsel %vm110, %v805, 0.0
    %v826 = vsel %vm111, %v806, 0.0
    %v827 = vsel %vm112, %v803, 0.0
    %832 = vrot.lane.b32.xlu0 %v803, 32
    %v833 = vpop.permute.xlu0 %832
    %834 = vrot.lane.b32.xlu0 %v804, 32
    %v835 = vpop.permute.xlu0 %834
    %836 = vrot.lane.b32.xlu0 %v805, 32
    %v837 = vpop.permute.xlu0 %836
    %838 = vrot.lane.b32.xlu0 %v806, 32
    %v839 = vpop.permute.xlu0 %838
    %848 = vrot.lane.b32.xlu0 %v824, 64
    %v849 = vpop.permute.xlu0 %848
    %850 = vrot.lane.b32.xlu0 %v825, 64
    %v851 = vpop.permute.xlu0 %850
    %852 = vrot.lane.b32.xlu0 %v826, 64
    %v853 = vpop.permute.xlu0 %852
    %854 = vrot.lane.b32.xlu0 %v827, 64
    %v855 = vpop.permute.xlu0 %854
    %v860 = vsel %vm307, %v820, %v833
    %v861 = vsel %vm307, %v821, %v835
    %v862 = vsel %vm307, %v822, %v837
    %v863 = vsel %vm307, %v823, %v839
    %v864 = vsel %vm312, %v860, %v849
    %v865 = vsel %vm312, %v861, %v851
    %v866 = vsel %vm312, %v862, %v853
    %v867 = vsel %vm312, %v863, %v855
    %s868 = scalar_lea.vmem %s4, 3
    %v869 = vld [vmem:[%s868] sm:$0x1]
    %v871 = vlaneseq
    %v872 = vshrl.u32 %v871, 7
    %v873 = vsub.s32 0, %v872
    %v874 = vrot.slane %v869, %v873
    %v877 = vsel %vm324, %v864, 0
    %v880 = vsel %vm324, %v865, 0
    %v883 = vsel %vm324, %v866, 0
    %v886 = vsel %vm324, %v867, 0
    %888 = vmatprep.subr.mxu0 0.0
    %889 = vmatpush1.msra.mxu0 0.0
    %890 = vmatprep.subr.mxu0 0.0
    %891 = vmatpush1.msra.mxu0 0.0
    %892 = vmatprep.subr.mxu0 0.0
    %893 = vmatpush1.msra.mxu0 0.0
    %894 = vmatprep.subr.mxu0 0.0
    %895 = vmatpush1.msra.mxu0 0.0
    %896 = vmatprep.subr.mxu0 0.0
    %897 = vmatpush1.msra.mxu0 %v819
    %898 = vmatprep.subr.mxu0 0.0
    %899 = vmatpush1.msra.mxu0 %v818
    %900 = vmatprep.subr.mxu0 0.0
    %901 = vmatpush1.msra.mxu0 %v817
    %902 = vmatprep.subr.mxu0 0.0
    %903 = vmatpush1.msra.mxu0 %v816
    %904 = vmatprep.subr.mxu0 0.0
    %905 = vmatpush1.msra.mxu0 %v815
    %906 = vmatprep.subr.mxu0 0.0
    %907 = vmatpush1.msra.mxu0 %v814
    %908 = vmatprep.subr.mxu0 0.0
    %909 = vmatpush1.msra.mxu0 %v813
    %910 = vmatprep.subr.mxu0 0.0
    %911 = vmatpush1.msra.mxu0 %v812
    %912 = vmatprep.subr.mxu0 0.0
    %913 = vmatpush1.msra.mxu0 %v811
    %914 = vmatprep.subr.mxu0 0.0
    %915 = vmatpush1.msra.mxu0 %v810
    %916 = vmatprep.subr.mxu0 0.0
    %917 = vmatpush1.msra.mxu0 %v809
    %918 = vmatprep.subr.mxu0 0.0
    %919 = vmatpush1.msra.mxu0 %v808
    %920 = vmatprep.subr.mxu0 0.0
    %921 = vmatpush2.msra.mxu0 0.0
    %922 = vmatprep.subr.mxu0 0.0
    %923 = vmatpush2.msra.mxu0 0.0
    %924 = vmatprep.subr.mxu0 0.0
    %925 = vmatpush2.msra.mxu0 0.0
    %926 = vmatprep.subr.mxu0 0.0
    %927 = vmatpush2.msra.mxu0 0.0
    %928 = vmatprep.subr.mxu0 0.0
    %929 = vmatpush2.msra.mxu0 0.0
    %930 = vmatprep.subr.mxu0 0.0
    %931 = vmatpush2.msra.mxu0 0.0
    %932 = vmatprep.subr.mxu0 0.0
    %933 = vmatpush2.msra.mxu0 0.0
    %934 = vmatprep.subr.mxu0 0.0
    %935 = vmatpush2.msra.mxu0 0.0
    %936 = vmatprep.subr.mxu0 0.0
    %937 = vmatpush2.msra.mxu0 0.0
    %938 = vmatprep.subr.mxu0 0.0
    %939 = vmatpush2.msra.mxu0 0.0
    %940 = vmatprep.subr.mxu0 0.0
    %941 = vmatpush2.msra.mxu0 0.0
    %942 = vmatprep.subr.mxu0 0.0
    %943 = vmatpush2.msra.mxu0 0.0
    %944 = vmatprep.subr.mxu0 0.0
    %945 = vmatpush2.msra.mxu0 0.0
    %946 = vmatprep.subr.mxu0 0.0
    %947 = vmatpush2.msra.mxu0 0.0
    %948 = vmatprep.subr.mxu0 0.0
    %949 = vmatpush2.msra.mxu0 0.0
    %950 = vmatprep.subr.mxu0 0.0
    %951 = vmatpush2.msra.mxu0 0.0
    %952 = vmatprep.mubr.f32.mxu0 0.0
    %953 = vmatmul.mubr.f32.gmra.mxu0 %v877
    %v954 = vpop.f32.mrf.mxu0
    %v955 = vadd.f32 %v874, %v954
    %v956 = vpop.f32.mrf.mxu0
    %957 = vmatprep.mubr.f32.mxu0 0.0
    %958 = vmatmul.mubr.f32.gmra.mxu0 %v880
    %v959 = vpop.f32.mrf.mxu0
    %v960 = vadd.f32 %v874, %v959
    %v961 = vpop.f32.mrf.mxu0
    %962 = vmatprep.mubr.f32.mxu0 0.0
    %963 = vmatmul.mubr.f32.gmra.mxu0 %v883
    %v964 = vpop.f32.mrf.mxu0
    %v965 = vadd.f32 %v874, %v964
    %v966 = vpop.f32.mrf.mxu0
    %967 = vmatprep.mubr.f32.mxu0 0.0
    %968 = vmatmul.mubr.f32.gmra.mxu0 %v886
    %v969 = vpop.f32.mrf.mxu0
    %v970 = vadd.f32 %v874, %v969
    %v971 = vpop.f32.mrf.mxu0
    %972 = vdwg.mxu0
    %v973 = vmax.f32 %v955, 0.0
    %v974 = vmax.f32 %v960, 0.0
    %v975 = vmax.f32 %v965, 0.0
    %v976 = vmax.f32 %v970, 0.0
    %s977 = scalar_lea.vmem %s3, 384
    %v978 = vld [vmem:[%s977 + $0x20] sm:$0xff]
    %v979 = vld [vmem:[%s977 + $0x28] sm:$0xff]
    %v980 = vld [vmem:[%s977 + $0x30] sm:$0xff]
    %v981 = vld [vmem:[%s977 + $0x38] sm:$0xff]
    %s982 = scalar_lea.vmem %s4, 4
    %v983 = vld [vmem:[%s982] sm:$0x1]
    %v985 = vlaneseq
    %v986 = vshrl.u32 %v985, 7
    %v987 = vsub.s32 0, %v986
    %v988 = vrot.slane %v983, %v987
    %v991 = vsel %vm307, %v973, 0
    %v994 = vsel %vm307, %v974, 0
    %v997 = vsel %vm307, %v975, 0
    %v1000 = vsel %vm307, %v976, 0
    %1002 = vmatprep.subr.mxu0 0.0
    %1003 = vmatpush1.msra.mxu0 0.0
    %1004 = vmatprep.subr.mxu0 0.0
    %1005 = vmatpush1.msra.mxu0 0.0
    %1006 = vmatprep.subr.mxu0 0.0
    %1007 = vmatpush1.msra.mxu0 0.0
    %1008 = vmatprep.subr.mxu0 0.0
    %1009 = vmatpush1.msra.mxu0 0.0
    %1010 = vmatprep.subr.mxu0 0.0
    %1011 = vmatpush1.msra.mxu0 0.0
    %1012 = vmatprep.subr.mxu0 0.0
    %1013 = vmatpush1.msra.mxu0 0.0
    %1014 = vmatprep.subr.mxu0 0.0
    %1015 = vmatpush1.msra.mxu0 0.0
    %1016 = vmatprep.subr.mxu0 0.0
    %1017 = vmatpush1.msra.mxu0 0.0
    %1018 = vmatprep.subr.mxu0 0.0
    %1019 = vmatpush1.msra.mxu0 0.0
    %1020 = vmatprep.subr.mxu0 0.0
    %1021 = vmatpush1.msra.mxu0 0.0
    %1022 = vmatprep.subr.mxu0 0.0
    %1023 = vmatpush1.msra.mxu0 0.0
    %1024 = vmatprep.subr.mxu0 0.0
    %1025 = vmatpush1.msra.mxu0 0.0
    %1026 = vmatprep.subr.mxu0 0.0
    %1027 = vmatpush1.msra.mxu0 %v981
    %1028 = vmatprep.subr.mxu0 0.0
    %1029 = vmatpush1.msra.mxu0 %v980
    %1030 = vmatprep.subr.mxu0 0.0
    %1031 = vmatpush1.msra.mxu0 %v979
    %1032 = vmatprep.subr.mxu0 0.0
    %1033 = vmatpush1.msra.mxu0 %v978
    %1034 = vmatprep.subr.mxu0 0.0
    %1035 = vmatpush2.msra.mxu0 0.0
    %1036 = vmatprep.subr.mxu0 0.0
    %1037 = vmatpush2.msra.mxu0 0.0
    %1038 = vmatprep.subr.mxu0 0.0
    %1039 = vmatpush2.msra.mxu0 0.0
    %1040 = vmatprep.subr.mxu0 0.0
    %1041 = vmatpush2.msra.mxu0 0.0
    %1042 = vmatprep.subr.mxu0 0.0
    %1043 = vmatpush2.msra.mxu0 0.0
    %1044 = vmatprep.subr.mxu0 0.0
    %1045 = vmatpush2.msra.mxu0 0.0
    %1046 = vmatprep.subr.mxu0 0.0
    %1047 = vmatpush2.msra.mxu0 0.0
    %1048 = vmatprep.subr.mxu0 0.0
    %1049 = vmatpush2.msra.mxu0 0.0
    %1050 = vmatprep.subr.mxu0 0.0
    %1051 = vmatpush2.msra.mxu0 0.0
    %1052 = vmatprep.subr.mxu0 0.0
    %1053 = vmatpush2.msra.mxu0 0.0
    %1054 = vmatprep.subr.mxu0 0.0
    %1055 = vmatpush2.msra.mxu0 0.0
    %1056 = vmatprep.subr.mxu0 0.0
    %1057 = vmatpush2.msra.mxu0 0.0
    %1058 = vmatprep.subr.mxu0 0.0
    %1059 = vmatpush2.msra.mxu0 0.0
    %1060 = vmatprep.subr.mxu0 0.0
    %1061 = vmatpush2.msra.mxu0 0.0
    %1062 = vmatprep.subr.mxu0 0.0
    %1063 = vmatpush2.msra.mxu0 0.0
    %1064 = vmatprep.subr.mxu0 0.0
    %1065 = vmatpush2.msra.mxu0 0.0
    %1066 = vmatprep.mubr.f32.mxu0 0.0
    %1067 = vmatmul.mubr.f32.gmra.mxu0 %v991
    %v1068 = vpop.f32.mrf.mxu0
    %v1069 = vadd.f32 %v988, %v1068
    %v1070 = vpop.f32.mrf.mxu0
    %1071 = vmatprep.mubr.f32.mxu0 0.0
    %1072 = vmatmul.mubr.f32.gmra.mxu0 %v994
    %v1073 = vpop.f32.mrf.mxu0
    %v1074 = vadd.f32 %v988, %v1073
    %v1075 = vpop.f32.mrf.mxu0
    %1076 = vmatprep.mubr.f32.mxu0 0.0
    %1077 = vmatmul.mubr.f32.gmra.mxu0 %v997
    %v1078 = vpop.f32.mrf.mxu0
    %v1079 = vadd.f32 %v988, %v1078
    %v1080 = vpop.f32.mrf.mxu0
    %1081 = vmatprep.mubr.f32.mxu0 0.0
    %1082 = vmatmul.mubr.f32.gmra.mxu0 %v1000
    %v1083 = vpop.f32.mrf.mxu0
    %v1084 = vadd.f32 %v988, %v1083
    %v1085 = vpop.f32.mrf.mxu0
    %1086 = vdwg.mxu0
    %v1087 = vmax.f32 %v1069, 0.0
    %v1088 = vmax.f32 %v1074, 0.0
    %v1089 = vmax.f32 %v1079, 0.0
    %v1090 = vmax.f32 %v1084, 0.0
    %s1091 = scalar_lea.vmem %s3, 480
    %v1092 = vld [vmem:[%s1091 + $0x20] sm:$0xff]
    %v1093 = vld [vmem:[%s1091 + $0x28] sm:$0xff]
    %v1094 = vld [vmem:[%s1091 + $0x30] sm:$0xff]
    %v1095 = vld [vmem:[%s1091 + $0x38] sm:$0xff]
    %s1096 = scalar_lea.vmem %s4, 5
    %v1097 = vld [vmem:[%s1096] sm:$0x1]
    %v1099 = vlaneseq
    %v1100 = vshrl.u32 %v1099, 7
    %v1101 = vsub.s32 0, %v1100
    %v1102 = vrot.slane %v1097, %v1101
    %v1105 = vsel %vm307, %v1087, 0
    %v1108 = vsel %vm307, %v1088, 0
    %v1111 = vsel %vm307, %v1089, 0
    %v1114 = vsel %vm307, %v1090, 0
    %1116 = vmatprep.subr.mxu0 0.0
    %1117 = vmatpush1.msra.mxu0 0.0
    %1118 = vmatprep.subr.mxu0 0.0
    %1119 = vmatpush1.msra.mxu0 0.0
    %1120 = vmatprep.subr.mxu0 0.0
    %1121 = vmatpush1.msra.mxu0 0.0
    %1122 = vmatprep.subr.mxu0 0.0
    %1123 = vmatpush1.msra.mxu0 0.0
    %1124 = vmatprep.subr.mxu0 0.0
    %1125 = vmatpush1.msra.mxu0 0.0
    %1126 = vmatprep.subr.mxu0 0.0
    %1127 = vmatpush1.msra.mxu0 0.0
    %1128 = vmatprep.subr.mxu0 0.0
    %1129 = vmatpush1.msra.mxu0 0.0
    %1130 = vmatprep.subr.mxu0 0.0
    %1131 = vmatpush1.msra.mxu0 0.0
    %1132 = vmatprep.subr.mxu0 0.0
    %1133 = vmatpush1.msra.mxu0 0.0
    %1134 = vmatprep.subr.mxu0 0.0
    %1135 = vmatpush1.msra.mxu0 0.0
    %1136 = vmatprep.subr.mxu0 0.0
    %1137 = vmatpush1.msra.mxu0 0.0
    %1138 = vmatprep.subr.mxu0 0.0
    %1139 = vmatpush1.msra.mxu0 0.0
    %1140 = vmatprep.subr.mxu0 0.0
    %1141 = vmatpush1.msra.mxu0 %v1095
    %1142 = vmatprep.subr.mxu0 0.0
    %1143 = vmatpush1.msra.mxu0 %v1094
    %1144 = vmatprep.subr.mxu0 0.0
    %1145 = vmatpush1.msra.mxu0 %v1093
    %1146 = vmatprep.subr.mxu0 0.0
    %1147 = vmatpush1.msra.mxu0 %v1092
    %1148 = vmatprep.subr.mxu0 0.0
    %1149 = vmatpush2.msra.mxu0 0.0
    %1150 = vmatprep.subr.mxu0 0.0
    %1151 = vmatpush2.msra.mxu0 0.0
    %1152 = vmatprep.subr.mxu0 0.0
    %1153 = vmatpush2.msra.mxu0 0.0
    %1154 = vmatprep.subr.mxu0 0.0
    %1155 = vmatpush2.msra.mxu0 0.0
    %1156 = vmatprep.subr.mxu0 0.0
    %1157 = vmatpush2.msra.mxu0 0.0
    %1158 = vmatprep.subr.mxu0 0.0
    %1159 = vmatpush2.msra.mxu0 0.0
    %1160 = vmatprep.subr.mxu0 0.0
    %1161 = vmatpush2.msra.mxu0 0.0
    %1162 = vmatprep.subr.mxu0 0.0
    %1163 = vmatpush2.msra.mxu0 0.0
    %1164 = vmatprep.subr.mxu0 0.0
    %1165 = vmatpush2.msra.mxu0 0.0
    %1166 = vmatprep.subr.mxu0 0.0
    %1167 = vmatpush2.msra.mxu0 0.0
    %1168 = vmatprep.subr.mxu0 0.0
    %1169 = vmatpush2.msra.mxu0 0.0
    %1170 = vmatprep.subr.mxu0 0.0
    %1171 = vmatpush2.msra.mxu0 0.0
    %1172 = vmatprep.subr.mxu0 0.0
    %1173 = vmatpush2.msra.mxu0 0.0
    %1174 = vmatprep.subr.mxu0 0.0
    %1175 = vmatpush2.msra.mxu0 0.0
    %1176 = vmatprep.subr.mxu0 0.0
    %1177 = vmatpush2.msra.mxu0 0.0
    %1178 = vmatprep.subr.mxu0 0.0
    %1179 = vmatpush2.msra.mxu0 0.0
    %1180 = vmatprep.mubr.f32.mxu0 0.0
    %1181 = vmatmul.mubr.f32.gmra.mxu0 %v1105
    %v1182 = vpop.f32.mrf.mxu0
    %v1183 = vadd.f32 %v1102, %v1182
    %v1184 = vpop.f32.mrf.mxu0
    %1185 = vmatprep.mubr.f32.mxu0 0.0
    %1186 = vmatmul.mubr.f32.gmra.mxu0 %v1108
    %v1187 = vpop.f32.mrf.mxu0
    %v1188 = vadd.f32 %v1102, %v1187
    %v1189 = vpop.f32.mrf.mxu0
    %1190 = vmatprep.mubr.f32.mxu0 0.0
    %1191 = vmatmul.mubr.f32.gmra.mxu0 %v1111
    %v1192 = vpop.f32.mrf.mxu0
    %v1193 = vadd.f32 %v1102, %v1192
    %v1194 = vpop.f32.mrf.mxu0
    %1195 = vmatprep.mubr.f32.mxu0 0.0
    %1196 = vmatmul.mubr.f32.gmra.mxu0 %v1114
    %v1197 = vpop.f32.mrf.mxu0
    %v1198 = vadd.f32 %v1102, %v1197
    %v1199 = vpop.f32.mrf.mxu0
    %1200 = vdwg.mxu0
    %v1201 = vmax.f32 %v1183, 0.0
    %v1202 = vmax.f32 %v1188, 0.0
    %v1203 = vmax.f32 %v1193, 0.0
    %v1204 = vmax.f32 %v1198, 0.0
    %s1205 = scalar_lea.vmem %s3, 576
    %v1206 = vld [vmem:[%s1205] sm:$0xff]
    %v1207 = vld [vmem:[%s1205 + $0x8] sm:$0xff]
    %v1208 = vld [vmem:[%s1205 + $0x10] sm:$0xff]
    %v1209 = vld [vmem:[%s1205 + $0x18] sm:$0xff]
    %v1210 = vld [vmem:[%s1205 + $0x20] sm:$0xff]
    %v1211 = vld [vmem:[%s1205 + $0x28] sm:$0xff]
    %v1212 = vld [vmem:[%s1205 + $0x30] sm:$0xff]
    %v1213 = vld [vmem:[%s1205 + $0x38] sm:$0xff]
    %v1214 = vld [vmem:[%s1205 + $0x40] sm:$0xff]
    %v1215 = vld [vmem:[%s1205 + $0x48] sm:$0xff]
    %v1216 = vld [vmem:[%s1205 + $0x50] sm:$0xff]
    %v1217 = vld [vmem:[%s1205 + $0x58] sm:$0xff]
    %v1219 = vrot.slane %v1204, 7
    %v1224 = vrot.slane %v1201, 7
    %v1225 = vrot.slane %v1202, 7
    %v1226 = vsel %vm245, %v1224, %v1225
    %v1227 = vrot.slane %v1203, 7
    %v1228 = vsel %vm245, %v1225, %v1227
    %v1229 = vsel %vm245, %v1227, %v1219
    %v1234 = vsel %vm245, %v1219, %v1224
    %v1235 = vsel %vm81, %v1234, 0.0
    %v1236 = vsel %vm82, %v1226, 0.0
    %v1237 = vsel %vm83, %v1228, 0.0
    %v1238 = vsel %vm84, %v1229, 0.0
    %v1239 = vrot.slane %v1201, 1
    %v1240 = vrot.slane %v1202, 1
    %v1241 = vsel %vm261, %v1239, %v1240
    %v1242 = vrot.slane %v1203, 1
    %v1243 = vsel %vm261, %v1240, %v1242
    %v1244 = vrot.slane %v1204, 1
    %v1245 = vsel %vm261, %v1242, %v1244
    %v1251 = vsel %vm261, %v1244, %v1239
    %v1252 = vsel %vm85, %v1241, 0.0
    %v1253 = vsel %vm86, %v1243, 0.0
    %v1254 = vsel %vm87, %v1245, 0.0
    %v1255 = vsel %vm88, %v1251, 0.0
    %1256 = vrot.lane.b32.xlu0 %v1201, 32
    %v1257 = vpop.permute.xlu0 %1256
    %1258 = vrot.lane.b32.xlu0 %v1202, 32
    %v1259 = vpop.permute.xlu0 %1258
    %1260 = vrot.lane.b32.xlu0 %v1203, 32
    %v1261 = vpop.permute.xlu0 %1260
    %1262 = vrot.lane.b32.xlu0 %v1204, 32
    %v1263 = vpop.permute.xlu0 %1262
    %1272 = vrot.lane.b32.xlu0 %v1252, 64
    %v1273 = vpop.permute.xlu0 %1272
    %1274 = vrot.lane.b32.xlu0 %v1253, 64
    %v1275 = vpop.permute.xlu0 %1274
    %1276 = vrot.lane.b32.xlu0 %v1254, 64
    %v1277 = vpop.permute.xlu0 %1276
    %1278 = vrot.lane.b32.xlu0 %v1255, 64
    %v1279 = vpop.permute.xlu0 %1278
    %v1284 = vsel %vm307, %v1235, %v1257
    %v1285 = vsel %vm307, %v1236, %v1259
    %v1286 = vsel %vm307, %v1237, %v1261
    %v1287 = vsel %vm307, %v1238, %v1263
    %v1288 = vsel %vm312, %v1284, %v1273
    %v1289 = vsel %vm312, %v1285, %v1275
    %v1290 = vsel %vm312, %v1286, %v1277
    %v1291 = vsel %vm312, %v1287, %v1279
    %s1292 = scalar_lea.vmem %s4, 6
    %v1293 = vld [vmem:[%s1292] sm:$0x1]
    %v1295 = vlaneseq
    %v1296 = vshrl.u32 %v1295, 7
    %v1297 = vsub.s32 0, %v1296
    %v1298 = vrot.slane %v1293, %v1297
    %v1301 = vsel %vm324, %v1288, 0
    %v1304 = vsel %vm324, %v1289, 0
    %v1307 = vsel %vm324, %v1290, 0
    %v1310 = vsel %vm324, %v1291, 0
    %1312 = vmatprep.subr.mxu0 0.0
    %1313 = vmatpush1.msra.mxu0 0.0
    %1314 = vmatprep.subr.mxu0 0.0
    %1315 = vmatpush1.msra.mxu0 0.0
    %1316 = vmatprep.subr.mxu0 0.0
    %1317 = vmatpush1.msra.mxu0 0.0
    %1318 = vmatprep.subr.mxu0 0.0
    %1319 = vmatpush1.msra.mxu0 0.0
    %1320 = vmatprep.subr.mxu0 0.0
    %1321 = vmatpush1.msra.mxu0 %v1217
    %1322 = vmatprep.subr.mxu0 0.0
    %1323 = vmatpush1.msra.mxu0 %v1216
    %1324 = vmatprep.subr.mxu0 0.0
    %1325 = vmatpush1.msra.mxu0 %v1215
    %1326 = vmatprep.subr.mxu0 0.0
    %1327 = vmatpush1.msra.mxu0 %v1214
    %1328 = vmatprep.subr.mxu0 0.0
    %1329 = vmatpush1.msra.mxu0 %v1213
    %1330 = vmatprep.subr.mxu0 0.0
    %1331 = vmatpush1.msra.mxu0 %v1212
    %1332 = vmatprep.subr.mxu0 0.0
    %1333 = vmatpush1.msra.mxu0 %v1211
    %1334 = vmatprep.subr.mxu0 0.0
    %1335 = vmatpush1.msra.mxu0 %v1210
    %1336 = vmatprep.subr.mxu0 0.0
    %1337 = vmatpush1.msra.mxu0 %v1209
    %1338 = vmatprep.subr.mxu0 0.0
    %1339 = vmatpush1.msra.mxu0 %v1208
    %1340 = vmatprep.subr.mxu0 0.0
    %1341 = vmatpush1.msra.mxu0 %v1207
    %1342 = vmatprep.subr.mxu0 0.0
    %1343 = vmatpush1.msra.mxu0 %v1206
    %1344 = vmatprep.subr.mxu0 0.0
    %1345 = vmatpush2.msra.mxu0 0.0
    %1346 = vmatprep.subr.mxu0 0.0
    %1347 = vmatpush2.msra.mxu0 0.0
    %1348 = vmatprep.subr.mxu0 0.0
    %1349 = vmatpush2.msra.mxu0 0.0
    %1350 = vmatprep.subr.mxu0 0.0
    %1351 = vmatpush2.msra.mxu0 0.0
    %1352 = vmatprep.subr.mxu0 0.0
    %1353 = vmatpush2.msra.mxu0 0.0
    %1354 = vmatprep.subr.mxu0 0.0
    %1355 = vmatpush2.msra.mxu0 0.0
    %1356 = vmatprep.subr.mxu0 0.0
    %1357 = vmatpush2.msra.mxu0 0.0
    %1358 = vmatprep.subr.mxu0 0.0
    %1359 = vmatpush2.msra.mxu0 0.0
    %1360 = vmatprep.subr.mxu0 0.0
    %1361 = vmatpush2.msra.mxu0 0.0
    %1362 = vmatprep.subr.mxu0 0.0
    %1363 = vmatpush2.msra.mxu0 0.0
    %1364 = vmatprep.subr.mxu0 0.0
    %1365 = vmatpush2.msra.mxu0 0.0
    %1366 = vmatprep.subr.mxu0 0.0
    %1367 = vmatpush2.msra.mxu0 0.0
    %1368 = vmatprep.subr.mxu0 0.0
    %1369 = vmatpush2.msra.mxu0 0.0
    %1370 = vmatprep.subr.mxu0 0.0
    %1371 = vmatpush2.msra.mxu0 0.0
    %1372 = vmatprep.subr.mxu0 0.0
    %1373 = vmatpush2.msra.mxu0 0.0
    %1374 = vmatprep.subr.mxu0 0.0
    %1375 = vmatpush2.msra.mxu0 0.0
    %1376 = vmatprep.mubr.f32.mxu0 0.0
    %1377 = vmatmul.mubr.f32.gmra.mxu0 %v1301
    %v1378 = vpop.f32.mrf.mxu0
    %v1379 = vadd.f32 %v1298, %v1378
    %v1380 = vpop.f32.mrf.mxu0
    %1381 = vmatprep.mubr.f32.mxu0 0.0
    %1382 = vmatmul.mubr.f32.gmra.mxu0 %v1304
    %v1383 = vpop.f32.mrf.mxu0
    %v1384 = vadd.f32 %v1298, %v1383
    %v1385 = vpop.f32.mrf.mxu0
    %1386 = vmatprep.mubr.f32.mxu0 0.0
    %1387 = vmatmul.mubr.f32.gmra.mxu0 %v1307
    %v1388 = vpop.f32.mrf.mxu0
    %v1389 = vadd.f32 %v1298, %v1388
    %v1390 = vpop.f32.mrf.mxu0
    %1391 = vmatprep.mubr.f32.mxu0 0.0
    %1392 = vmatmul.mubr.f32.gmra.mxu0 %v1310
    %v1393 = vpop.f32.mrf.mxu0
    %v1394 = vadd.f32 %v1298, %v1393
    %v1395 = vpop.f32.mrf.mxu0
    %1396 = vdwg.mxu0
    %v1397 = vmax.f32 %v1379, 0.0
    %v1398 = vmax.f32 %v1384, 0.0
    %v1399 = vmax.f32 %v1389, 0.0
    %v1400 = vmax.f32 %v1394, 0.0
    %v1401 = vadd.f32 %v223, %v1397
    %v1402 = vadd.f32 %v224, %v1398
    %v1403 = vadd.f32 %v225, %v1399
    %v1404 = vadd.f32 %v226, %v1400
    %s1405 = scalar_lea.vmem %s3, 672
    %v1406 = vld [vmem:[%s1405] sm:$0xff]
    %v1407 = vld [vmem:[%s1405 + $0x8] sm:$0xff]
    %v1408 = vld [vmem:[%s1405 + $0x10] sm:$0xff]
    %v1409 = vld [vmem:[%s1405 + $0x18] sm:$0xff]
    %v1410 = vld [vmem:[%s1405 + $0x20] sm:$0xff]
    %v1411 = vld [vmem:[%s1405 + $0x28] sm:$0xff]
    %v1412 = vld [vmem:[%s1405 + $0x30] sm:$0xff]
    %v1413 = vld [vmem:[%s1405 + $0x38] sm:$0xff]
    %v1414 = vld [vmem:[%s1405 + $0x40] sm:$0xff]
    %v1415 = vld [vmem:[%s1405 + $0x48] sm:$0xff]
    %v1416 = vld [vmem:[%s1405 + $0x50] sm:$0xff]
    %v1417 = vld [vmem:[%s1405 + $0x58] sm:$0xff]
    %v1419 = vrot.slane %v1404, 7
    %v1424 = vrot.slane %v1401, 7
    %v1425 = vrot.slane %v1402, 7
    %v1426 = vsel %vm245, %v1424, %v1425
    %v1427 = vrot.slane %v1403, 7
    %v1428 = vsel %vm245, %v1425, %v1427
    %v1429 = vsel %vm245, %v1427, %v1419
    %v1434 = vsel %vm245, %v1419, %v1424
    %v1435 = vsel %vm81, %v1434, 0.0
    %v1436 = vsel %vm82, %v1426, 0.0
    %v1437 = vsel %vm83, %v1428, 0.0
    %v1438 = vsel %vm84, %v1429, 0.0
    %v1439 = vrot.slane %v1401, 1
    %v1440 = vrot.slane %v1402, 1
    %v1441 = vsel %vm261, %v1439, %v1440
    %v1442 = vrot.slane %v1403, 1
    %v1443 = vsel %vm261, %v1440, %v1442
    %v1444 = vrot.slane %v1404, 1
    %v1445 = vsel %vm261, %v1442, %v1444
    %v1451 = vsel %vm261, %v1444, %v1439
    %v1452 = vsel %vm85, %v1441, 0.0
    %v1453 = vsel %vm86, %v1443, 0.0
    %v1454 = vsel %vm87, %v1445, 0.0
    %v1455 = vsel %vm88, %v1451, 0.0
    %1456 = vrot.lane.b32.xlu0 %v1401, 32
    %v1457 = vpop.permute.xlu0 %1456
    %1458 = vrot.lane.b32.xlu0 %v1402, 32
    %v1459 = vpop.permute.xlu0 %1458
    %1460 = vrot.lane.b32.xlu0 %v1403, 32
    %v1461 = vpop.permute.xlu0 %1460
    %1462 = vrot.lane.b32.xlu0 %v1404, 32
    %v1463 = vpop.permute.xlu0 %1462
    %1472 = vrot.lane.b32.xlu0 %v1452, 64
    %v1473 = vpop.permute.xlu0 %1472
    %1474 = vrot.lane.b32.xlu0 %v1453, 64
    %v1475 = vpop.permute.xlu0 %1474
    %1476 = vrot.lane.b32.xlu0 %v1454, 64
    %v1477 = vpop.permute.xlu0 %1476
    %1478 = vrot.lane.b32.xlu0 %v1455, 64
    %v1479 = vpop.permute.xlu0 %1478
    %v1484 = vsel %vm307, %v1435, %v1457
    %v1485 = vsel %vm307, %v1436, %v1459
    %v1486 = vsel %vm307, %v1437, %v1461
    %v1487 = vsel %vm307, %v1438, %v1463
    %v1488 = vsel %vm312, %v1484, %v1473
    %v1489 = vsel %vm312, %v1485, %v1475
    %v1490 = vsel %vm312, %v1486, %v1477
    %v1491 = vsel %vm312, %v1487, %v1479
    %s1492 = scalar_lea.vmem %s4, 7
    %v1493 = vld [vmem:[%s1492] sm:$0x1]
    %v1495 = vlaneseq
    %v1496 = vshrl.u32 %v1495, 7
    %v1497 = vsub.s32 0, %v1496
    %v1498 = vrot.slane %v1493, %v1497
    %v1501 = vsel %vm324, %v1488, 0
    %v1504 = vsel %vm324, %v1489, 0
    %v1507 = vsel %vm324, %v1490, 0
    %v1510 = vsel %vm324, %v1491, 0
    %1512 = vmatprep.subr.mxu0 0.0
    %1513 = vmatpush1.msra.mxu0 0.0
    %1514 = vmatprep.subr.mxu0 0.0
    %1515 = vmatpush1.msra.mxu0 0.0
    %1516 = vmatprep.subr.mxu0 0.0
    %1517 = vmatpush1.msra.mxu0 0.0
    %1518 = vmatprep.subr.mxu0 0.0
    %1519 = vmatpush1.msra.mxu0 0.0
    %1520 = vmatprep.subr.mxu0 0.0
    %1521 = vmatpush1.msra.mxu0 %v1417
    %1522 = vmatprep.subr.mxu0 0.0
    %1523 = vmatpush1.msra.mxu0 %v1416
    %1524 = vmatprep.subr.mxu0 0.0
    %1525 = vmatpush1.msra.mxu0 %v1415
    %1526 = vmatprep.subr.mxu0 0.0
    %1527 = vmatpush1.msra.mxu0 %v1414
    %1528 = vmatprep.subr.mxu0 0.0
    %1529 = vmatpush1.msra.mxu0 %v1413
    %1530 = vmatprep.subr.mxu0 0.0
    %1531 = vmatpush1.msra.mxu0 %v1412
    %1532 = vmatprep.subr.mxu0 0.0
    %1533 = vmatpush1.msra.mxu0 %v1411
    %1534 = vmatprep.subr.mxu0 0.0
    %1535 = vmatpush1.msra.mxu0 %v1410
    %1536 = vmatprep.subr.mxu0 0.0
    %1537 = vmatpush1.msra.mxu0 %v1409
    %1538 = vmatprep.subr.mxu0 0.0
    %1539 = vmatpush1.msra.mxu0 %v1408
    %1540 = vmatprep.subr.mxu0 0.0
    %1541 = vmatpush1.msra.mxu0 %v1407
    %1542 = vmatprep.subr.mxu0 0.0
    %1543 = vmatpush1.msra.mxu0 %v1406
    %1544 = vmatprep.subr.mxu0 0.0
    %1545 = vmatpush2.msra.mxu0 0.0
    %1546 = vmatprep.subr.mxu0 0.0
    %1547 = vmatpush2.msra.mxu0 0.0
    %1548 = vmatprep.subr.mxu0 0.0
    %1549 = vmatpush2.msra.mxu0 0.0
    %1550 = vmatprep.subr.mxu0 0.0
    %1551 = vmatpush2.msra.mxu0 0.0
    %1552 = vmatprep.subr.mxu0 0.0
    %1553 = vmatpush2.msra.mxu0 0.0
    %1554 = vmatprep.subr.mxu0 0.0
    %1555 = vmatpush2.msra.mxu0 0.0
    %1556 = vmatprep.subr.mxu0 0.0
    %1557 = vmatpush2.msra.mxu0 0.0
    %1558 = vmatprep.subr.mxu0 0.0
    %1559 = vmatpush2.msra.mxu0 0.0
    %1560 = vmatprep.subr.mxu0 0.0
    %1561 = vmatpush2.msra.mxu0 0.0
    %1562 = vmatprep.subr.mxu0 0.0
    %1563 = vmatpush2.msra.mxu0 0.0
    %1564 = vmatprep.subr.mxu0 0.0
    %1565 = vmatpush2.msra.mxu0 0.0
    %1566 = vmatprep.subr.mxu0 0.0
    %1567 = vmatpush2.msra.mxu0 0.0
    %1568 = vmatprep.subr.mxu0 0.0
    %1569 = vmatpush2.msra.mxu0 0.0
    %1570 = vmatprep.subr.mxu0 0.0
    %1571 = vmatpush2.msra.mxu0 0.0
    %1572 = vmatprep.subr.mxu0 0.0
    %1573 = vmatpush2.msra.mxu0 0.0
    %1574 = vmatprep.subr.mxu0 0.0
    %1575 = vmatpush2.msra.mxu0 0.0
    %1576 = vmatprep.mubr.f32.mxu0 0.0
    %1577 = vmatmul.mubr.f32.gmra.mxu0 %v1501
    %v1578 = vpop.f32.mrf.mxu0
    %v1579 = vadd.f32 %v1498, %v1578
    %v1580 = vpop.f32.mrf.mxu0
    %1581 = vmatprep.mubr.f32.mxu0 0.0
    %1582 = vmatmul.mubr.f32.gmra.mxu0 %v1504
    %v1583 = vpop.f32.mrf.mxu0
    %v1584 = vadd.f32 %v1498, %v1583
    %v1585 = vpop.f32.mrf.mxu0
    %1586 = vmatprep.mubr.f32.mxu0 0.0
    %1587 = vmatmul.mubr.f32.gmra.mxu0 %v1507
    %v1588 = vpop.f32.mrf.mxu0
    %v1589 = vadd.f32 %v1498, %v1588
    %v1590 = vpop.f32.mrf.mxu0
    %1591 = vmatprep.mubr.f32.mxu0 0.0
    %1592 = vmatmul.mubr.f32.gmra.mxu0 %v1510
    %v1593 = vpop.f32.mrf.mxu0
    %v1594 = vadd.f32 %v1498, %v1593
    %v1595 = vpop.f32.mrf.mxu0
    %1596 = vdwg.mxu0
    %v1597 = vmax.f32 %v1579, 0.0
    %v1598 = vmax.f32 %v1584, 0.0
    %v1599 = vmax.f32 %v1589, 0.0
    %v1600 = vmax.f32 %v1594, 0.0
    %s1601 = scalar_lea.vmem %s3, 768
    %v1602 = vld [vmem:[%s1601] sm:$0xff]
    %v1603 = vld [vmem:[%s1601 + $0x8] sm:$0xff]
    %v1604 = vld [vmem:[%s1601 + $0x10] sm:$0xff]
    %v1605 = vld [vmem:[%s1601 + $0x18] sm:$0xff]
    %v1606 = vld [vmem:[%s1601 + $0x20] sm:$0xff]
    %v1607 = vld [vmem:[%s1601 + $0x28] sm:$0xff]
    %v1608 = vld [vmem:[%s1601 + $0x30] sm:$0xff]
    %v1609 = vld [vmem:[%s1601 + $0x38] sm:$0xff]
    %v1610 = vld [vmem:[%s1601 + $0x40] sm:$0xff]
    %v1611 = vld [vmem:[%s1601 + $0x48] sm:$0xff]
    %v1612 = vld [vmem:[%s1601 + $0x50] sm:$0xff]
    %v1613 = vld [vmem:[%s1601 + $0x58] sm:$0xff]
    %v1615 = vrot.slane %v1600, 6
    %v1620 = vrot.slane %v1597, 6
    %v1621 = vrot.slane %v1598, 6
    %v1622 = vsel %vm445, %v1620, %v1621
    %v1623 = vrot.slane %v1599, 6
    %v1624 = vsel %vm445, %v1621, %v1623
    %v1625 = vsel %vm445, %v1623, %v1615
    %v1630 = vsel %vm445, %v1615, %v1620
    %v1631 = vsel %vm89, %v1630, 0.0
    %v1632 = vsel %vm90, %v1622, 0.0
    %v1633 = vsel %vm91, %v1624, 0.0
    %v1634 = vsel %vm92, %v1625, 0.0
    %v1635 = vrot.slane %v1597, 2
    %v1636 = vrot.slane %v1598, 2
    %v1637 = vsel %vm461, %v1635, %v1636
    %v1638 = vrot.slane %v1599, 2
    %v1639 = vsel %vm461, %v1636, %v1638
    %v1640 = vrot.slane %v1600, 2
    %v1641 = vsel %vm461, %v1638, %v1640
    %v1647 = vsel %vm461, %v1640, %v1635
    %v1648 = vsel %vm93, %v1637, 0.0
    %v1649 = vsel %vm94, %v1639, 0.0
    %v1650 = vsel %vm95, %v1641, 0.0
    %v1651 = vsel %vm96, %v1647, 0.0
    %1652 = vrot.lane.b32.xlu0 %v1597, 32
    %v1653 = vpop.permute.xlu0 %1652
    %1654 = vrot.lane.b32.xlu0 %v1598, 32
    %v1655 = vpop.permute.xlu0 %1654
    %1656 = vrot.lane.b32.xlu0 %v1599, 32
    %v1657 = vpop.permute.xlu0 %1656
    %1658 = vrot.lane.b32.xlu0 %v1600, 32
    %v1659 = vpop.permute.xlu0 %1658
    %1668 = vrot.lane.b32.xlu0 %v1648, 64
    %v1669 = vpop.permute.xlu0 %1668
    %1670 = vrot.lane.b32.xlu0 %v1649, 64
    %v1671 = vpop.permute.xlu0 %1670
    %1672 = vrot.lane.b32.xlu0 %v1650, 64
    %v1673 = vpop.permute.xlu0 %1672
    %1674 = vrot.lane.b32.xlu0 %v1651, 64
    %v1675 = vpop.permute.xlu0 %1674
    %v1680 = vsel %vm307, %v1631, %v1653
    %v1681 = vsel %vm307, %v1632, %v1655
    %v1682 = vsel %vm307, %v1633, %v1657
    %v1683 = vsel %vm307, %v1634, %v1659
    %v1684 = vsel %vm312, %v1680, %v1669
    %v1685 = vsel %vm312, %v1681, %v1671
    %v1686 = vsel %vm312, %v1682, %v1673
    %v1687 = vsel %vm312, %v1683, %v1675
    %s1688 = scalar_lea.vmem %s4, 8
    %v1689 = vld [vmem:[%s1688] sm:$0x1]
    %v1691 = vlaneseq
    %v1692 = vshrl.u32 %v1691, 7
    %v1693 = vsub.s32 0, %v1692
    %v1694 = vrot.slane %v1689, %v1693
    %v1697 = vsel %vm324, %v1684, 0
    %v1700 = vsel %vm324, %v1685, 0
    %v1703 = vsel %vm324, %v1686, 0
    %v1706 = vsel %vm324, %v1687, 0
    %1708 = vmatprep.subr.mxu0 0.0
    %1709 = vmatpush1.msra.mxu0 0.0
    %1710 = vmatprep.subr.mxu0 0.0
    %1711 = vmatpush1.msra.mxu0 0.0
    %1712 = vmatprep.subr.mxu0 0.0
    %1713 = vmatpush1.msra.mxu0 0.0
    %1714 = vmatprep.subr.mxu0 0.0
    %1715 = vmatpush1.msra.mxu0 0.0
    %1716 = vmatprep.subr.mxu0 0.0
    %1717 = vmatpush1.msra.mxu0 %v1613
    %1718 = vmatprep.subr.mxu0 0.0
    %1719 = vmatpush1.msra.mxu0 %v1612
    %1720 = vmatprep.subr.mxu0 0.0
    %1721 = vmatpush1.msra.mxu0 %v1611
    %1722 = vmatprep.subr.mxu0 0.0
    %1723 = vmatpush1.msra.mxu0 %v1610
    %1724 = vmatprep.subr.mxu0 0.0
    %1725 = vmatpush1.msra.mxu0 %v1609
    %1726 = vmatprep.subr.mxu0 0.0
    %1727 = vmatpush1.msra.mxu0 %v1608
    %1728 = vmatprep.subr.mxu0 0.0
    %1729 = vmatpush1.msra.mxu0 %v1607
    %1730 = vmatprep.subr.mxu0 0.0
    %1731 = vmatpush1.msra.mxu0 %v1606
    %1732 = vmatprep.subr.mxu0 0.0
    %1733 = vmatpush1.msra.mxu0 %v1605
    %1734 = vmatprep.subr.mxu0 0.0
    %1735 = vmatpush1.msra.mxu0 %v1604
    %1736 = vmatprep.subr.mxu0 0.0
    %1737 = vmatpush1.msra.mxu0 %v1603
    %1738 = vmatprep.subr.mxu0 0.0
    %1739 = vmatpush1.msra.mxu0 %v1602
    %1740 = vmatprep.subr.mxu0 0.0
    %1741 = vmatpush2.msra.mxu0 0.0
    %1742 = vmatprep.subr.mxu0 0.0
    %1743 = vmatpush2.msra.mxu0 0.0
    %1744 = vmatprep.subr.mxu0 0.0
    %1745 = vmatpush2.msra.mxu0 0.0
    %1746 = vmatprep.subr.mxu0 0.0
    %1747 = vmatpush2.msra.mxu0 0.0
    %1748 = vmatprep.subr.mxu0 0.0
    %1749 = vmatpush2.msra.mxu0 0.0
    %1750 = vmatprep.subr.mxu0 0.0
    %1751 = vmatpush2.msra.mxu0 0.0
    %1752 = vmatprep.subr.mxu0 0.0
    %1753 = vmatpush2.msra.mxu0 0.0
    %1754 = vmatprep.subr.mxu0 0.0
    %1755 = vmatpush2.msra.mxu0 0.0
    %1756 = vmatprep.subr.mxu0 0.0
    %1757 = vmatpush2.msra.mxu0 0.0
    %1758 = vmatprep.subr.mxu0 0.0
    %1759 = vmatpush2.msra.mxu0 0.0
    %1760 = vmatprep.subr.mxu0 0.0
    %1761 = vmatpush2.msra.mxu0 0.0
    %1762 = vmatprep.subr.mxu0 0.0
    %1763 = vmatpush2.msra.mxu0 0.0
    %1764 = vmatprep.subr.mxu0 0.0
    %1765 = vmatpush2.msra.mxu0 0.0
    %1766 = vmatprep.subr.mxu0 0.0
    %1767 = vmatpush2.msra.mxu0 0.0
    %1768 = vmatprep.subr.mxu0 0.0
    %1769 = vmatpush2.msra.mxu0 0.0
    %1770 = vmatprep.subr.mxu0 0.0
    %1771 = vmatpush2.msra.mxu0 0.0
    %1772 = vmatprep.mubr.f32.mxu0 0.0
    %1773 = vmatmul.mubr.f32.gmra.mxu0 %v1697
    %v1774 = vpop.f32.mrf.mxu0
    %v1775 = vadd.f32 %v1694, %v1774
    %v1776 = vpop.f32.mrf.mxu0
    %1777 = vmatprep.mubr.f32.mxu0 0.0
    %1778 = vmatmul.mubr.f32.gmra.mxu0 %v1700
    %v1779 = vpop.f32.mrf.mxu0
    %v1780 = vadd.f32 %v1694, %v1779
    %v1781 = vpop.f32.mrf.mxu0
    %1782 = vmatprep.mubr.f32.mxu0 0.0
    %1783 = vmatmul.mubr.f32.gmra.mxu0 %v1703
    %v1784 = vpop.f32.mrf.mxu0
    %v1785 = vadd.f32 %v1694, %v1784
    %v1786 = vpop.f32.mrf.mxu0
    %1787 = vmatprep.mubr.f32.mxu0 0.0
    %1788 = vmatmul.mubr.f32.gmra.mxu0 %v1706
    %v1789 = vpop.f32.mrf.mxu0
    %v1790 = vadd.f32 %v1694, %v1789
    %v1791 = vpop.f32.mrf.mxu0
    %1792 = vdwg.mxu0
    %v1793 = vmax.f32 %v1775, 0.0
    %v1794 = vmax.f32 %v1780, 0.0
    %v1795 = vmax.f32 %v1785, 0.0
    %v1796 = vmax.f32 %v1790, 0.0
    %s1797 = scalar_lea.vmem %s3, 864
    %v1798 = vld [vmem:[%s1797] sm:$0xff]
    %v1799 = vld [vmem:[%s1797 + $0x8] sm:$0xff]
    %v1800 = vld [vmem:[%s1797 + $0x10] sm:$0xff]
    %v1801 = vld [vmem:[%s1797 + $0x18] sm:$0xff]
    %v1802 = vld [vmem:[%s1797 + $0x20] sm:$0xff]
    %v1803 = vld [vmem:[%s1797 + $0x28] sm:$0xff]
    %v1804 = vld [vmem:[%s1797 + $0x30] sm:$0xff]
    %v1805 = vld [vmem:[%s1797 + $0x38] sm:$0xff]
    %v1806 = vld [vmem:[%s1797 + $0x40] sm:$0xff]
    %v1807 = vld [vmem:[%s1797 + $0x48] sm:$0xff]
    %v1808 = vld [vmem:[%s1797 + $0x50] sm:$0xff]
    %v1809 = vld [vmem:[%s1797 + $0x58] sm:$0xff]
    %v1811 = vrot.slane %v1796, 4
    %v1816 = vrot.slane %v1793, 4
    %v1817 = vrot.slane %v1794, 4
    %v1818 = vsel %vm134, %v1816, %v1817
    %v1819 = vrot.slane %v1795, 4
    %v1820 = vsel %vm134, %v1817, %v1819
    %v1821 = vsel %vm134, %v1819, %v1811
    %v1826 = vsel %vm134, %v1811, %v1816
    %v1827 = vsel %vm97, %v1826, 0.0
    %v1828 = vsel %vm98, %v1818, 0.0
    %v1829 = vsel %vm99, %v1820, 0.0
    %v1830 = vsel %vm100, %v1821, 0.0
    %v1831 = vsel %vm101, %v1818, 0.0
    %v1832 = vsel %vm102, %v1820, 0.0
    %v1833 = vsel %vm103, %v1821, 0.0
    %v1834 = vsel %vm104, %v1826, 0.0
    %1835 = vrot.lane.b32.xlu0 %v1793, 32
    %v1836 = vpop.permute.xlu0 %1835
    %1837 = vrot.lane.b32.xlu0 %v1794, 32
    %v1838 = vpop.permute.xlu0 %1837
    %1839 = vrot.lane.b32.xlu0 %v1795, 32
    %v1840 = vpop.permute.xlu0 %1839
    %1841 = vrot.lane.b32.xlu0 %v1796, 32
    %v1842 = vpop.permute.xlu0 %1841
    %1851 = vrot.lane.b32.xlu0 %v1831, 64
    %v1852 = vpop.permute.xlu0 %1851
    %1853 = vrot.lane.b32.xlu0 %v1832, 64
    %v1854 = vpop.permute.xlu0 %1853
    %1855 = vrot.lane.b32.xlu0 %v1833, 64
    %v1856 = vpop.permute.xlu0 %1855
    %1857 = vrot.lane.b32.xlu0 %v1834, 64
    %v1858 = vpop.permute.xlu0 %1857
    %v1863 = vsel %vm307, %v1827, %v1836
    %v1864 = vsel %vm307, %v1828, %v1838
    %v1865 = vsel %vm307, %v1829, %v1840
    %v1866 = vsel %vm307, %v1830, %v1842
    %v1867 = vsel %vm312, %v1863, %v1852
    %v1868 = vsel %vm312, %v1864, %v1854
    %v1869 = vsel %vm312, %v1865, %v1856
    %v1870 = vsel %vm312, %v1866, %v1858
    %s1871 = scalar_lea.vmem %s4, 9
    %v1872 = vld [vmem:[%s1871] sm:$0x1]
    %v1874 = vlaneseq
    %v1875 = vshrl.u32 %v1874, 7
    %v1876 = vsub.s32 0, %v1875
    %v1877 = vrot.slane %v1872, %v1876
    %v1880 = vsel %vm324, %v1867, 0
    %v1883 = vsel %vm324, %v1868, 0
    %v1886 = vsel %vm324, %v1869, 0
    %v1889 = vsel %vm324, %v1870, 0
    %1891 = vmatprep.subr.mxu0 0.0
    %1892 = vmatpush1.msra.mxu0 0.0
    %1893 = vmatprep.subr.mxu0 0.0
    %1894 = vmatpush1.msra.mxu0 0.0
    %1895 = vmatprep.subr.mxu0 0.0
    %1896 = vmatpush1.msra.mxu0 0.0
    %1897 = vmatprep.subr.mxu0 0.0
    %1898 = vmatpush1.msra.mxu0 0.0
    %1899 = vmatprep.subr.mxu0 0.0
    %1900 = vmatpush1.msra.mxu0 %v1809
    %1901 = vmatprep.subr.mxu0 0.0
    %1902 = vmatpush1.msra.mxu0 %v1808
    %1903 = vmatprep.subr.mxu0 0.0
    %1904 = vmatpush1.msra.mxu0 %v1807
    %1905 = vmatprep.subr.mxu0 0.0
    %1906 = vmatpush1.msra.mxu0 %v1806
    %1907 = vmatprep.subr.mxu0 0.0
    %1908 = vmatpush1.msra.mxu0 %v1805
    %1909 = vmatprep.subr.mxu0 0.0
    %1910 = vmatpush1.msra.mxu0 %v1804
    %1911 = vmatprep.subr.mxu0 0.0
    %1912 = vmatpush1.msra.mxu0 %v1803
    %1913 = vmatprep.subr.mxu0 0.0
    %1914 = vmatpush1.msra.mxu0 %v1802
    %1915 = vmatprep.subr.mxu0 0.0
    %1916 = vmatpush1.msra.mxu0 %v1801
    %1917 = vmatprep.subr.mxu0 0.0
    %1918 = vmatpush1.msra.mxu0 %v1800
    %1919 = vmatprep.subr.mxu0 0.0
    %1920 = vmatpush1.msra.mxu0 %v1799
    %1921 = vmatprep.subr.mxu0 0.0
    %1922 = vmatpush1.msra.mxu0 %v1798
    %1923 = vmatprep.subr.mxu0 0.0
    %1924 = vmatpush2.msra.mxu0 0.0
    %1925 = vmatprep.subr.mxu0 0.0
    %1926 = vmatpush2.msra.mxu0 0.0
    %1927 = vmatprep.subr.mxu0 0.0
    %1928 = vmatpush2.msra.mxu0 0.0
    %1929 = vmatprep.subr.mxu0 0.0
    %1930 = vmatpush2.msra.mxu0 0.0
    %1931 = vmatprep.subr.mxu0 0.0
    %1932 = vmatpush2.msra.mxu0 0.0
    %1933 = vmatprep.subr.mxu0 0.0
    %1934 = vmatpush2.msra.mxu0 0.0
    %1935 = vmatprep.subr.mxu0 0.0
    %1936 = vmatpush2.msra.mxu0 0.0
    %1937 = vmatprep.subr.mxu0 0.0
    %1938 = vmatpush2.msra.mxu0 0.0
    %1939 = vmatprep.subr.mxu0 0.0
    %1940 = vmatpush2.msra.mxu0 0.0
    %1941 = vmatprep.subr.mxu0 0.0
    %1942 = vmatpush2.msra.mxu0 0.0
    %1943 = vmatprep.subr.mxu0 0.0
    %1944 = vmatpush2.msra.mxu0 0.0
    %1945 = vmatprep.subr.mxu0 0.0
    %1946 = vmatpush2.msra.mxu0 0.0
    %1947 = vmatprep.subr.mxu0 0.0
    %1948 = vmatpush2.msra.mxu0 0.0
    %1949 = vmatprep.subr.mxu0 0.0
    %1950 = vmatpush2.msra.mxu0 0.0
    %1951 = vmatprep.subr.mxu0 0.0
    %1952 = vmatpush2.msra.mxu0 0.0
    %1953 = vmatprep.subr.mxu0 0.0
    %1954 = vmatpush2.msra.mxu0 0.0
    %1955 = vmatprep.mubr.f32.mxu0 0.0
    %1956 = vmatmul.mubr.f32.gmra.mxu0 %v1880
    %v1957 = vpop.f32.mrf.mxu0
    %v1958 = vadd.f32 %v1877, %v1957
    %v1959 = vpop.f32.mrf.mxu0
    %1960 = vmatprep.mubr.f32.mxu0 0.0
    %1961 = vmatmul.mubr.f32.gmra.mxu0 %v1883
    %v1962 = vpop.f32.mrf.mxu0
    %v1963 = vadd.f32 %v1877, %v1962
    %v1964 = vpop.f32.mrf.mxu0
    %1965 = vmatprep.mubr.f32.mxu0 0.0
    %1966 = vmatmul.mubr.f32.gmra.mxu0 %v1886
    %v1967 = vpop.f32.mrf.mxu0
    %v1968 = vadd.f32 %v1877, %v1967
    %v1969 = vpop.f32.mrf.mxu0
    %1970 = vmatprep.mubr.f32.mxu0 0.0
    %1971 = vmatmul.mubr.f32.gmra.mxu0 %v1889
    %v1972 = vpop.f32.mrf.mxu0
    %v1973 = vadd.f32 %v1877, %v1972
    %v1974 = vpop.f32.mrf.mxu0
    %1975 = vdwg.mxu0
    %v1976 = vmax.f32 %v1958, 0.0
    %v1977 = vmax.f32 %v1963, 0.0
    %v1978 = vmax.f32 %v1968, 0.0
    %v1979 = vmax.f32 %v1973, 0.0
    %s1980 = scalar_lea.vmem %s3, 960
    %v1981 = vld [vmem:[%s1980] sm:$0xff]
    %v1982 = vld [vmem:[%s1980 + $0x8] sm:$0xff]
    %v1983 = vld [vmem:[%s1980 + $0x10] sm:$0xff]
    %v1984 = vld [vmem:[%s1980 + $0x18] sm:$0xff]
    %v1985 = vld [vmem:[%s1980 + $0x20] sm:$0xff]
    %v1986 = vld [vmem:[%s1980 + $0x28] sm:$0xff]
    %v1987 = vld [vmem:[%s1980 + $0x30] sm:$0xff]
    %v1988 = vld [vmem:[%s1980 + $0x38] sm:$0xff]
    %v1989 = vld [vmem:[%s1980 + $0x40] sm:$0xff]
    %v1990 = vld [vmem:[%s1980 + $0x48] sm:$0xff]
    %v1991 = vld [vmem:[%s1980 + $0x50] sm:$0xff]
    %v1992 = vld [vmem:[%s1980 + $0x58] sm:$0xff]
    %v1993 = vsel %vm105, %v1979, 0.0
    %v1994 = vsel %vm106, %v1976, 0.0
    %v1995 = vsel %vm107, %v1977, 0.0
    %v1996 = vsel %vm108, %v1978, 0.0
    %v1997 = vsel %vm109, %v1977, 0.0
    %v1998 = vsel %vm110, %v1978, 0.0
    %v1999 = vsel %vm111, %v1979, 0.0
    %v2000 = vsel %vm112, %v1976, 0.0
    %2005 = vrot.lane.b32.xlu0 %v1976, 32
    %v2006 = vpop.permute.xlu0 %2005
    %2007 = vrot.lane.b32.xlu0 %v1977, 32
    %v2008 = vpop.permute.xlu0 %2007
    %2009 = vrot.lane.b32.xlu0 %v1978, 32
    %v2010 = vpop.permute.xlu0 %2009
    %2011 = vrot.lane.b32.xlu0 %v1979, 32
    %v2012 = vpop.permute.xlu0 %2011
    %2021 = vrot.lane.b32.xlu0 %v1997, 64
    %v2022 = vpop.permute.xlu0 %2021
    %2023 = vrot.lane.b32.xlu0 %v1998, 64
    %v2024 = vpop.permute.xlu0 %2023
    %2025 = vrot.lane.b32.xlu0 %v1999, 64
    %v2026 = vpop.permute.xlu0 %2025
    %2027 = vrot.lane.b32.xlu0 %v2000, 64
    %v2028 = vpop.permute.xlu0 %2027
    %v2033 = vsel %vm307, %v1993, %v2006
    %v2034 = vsel %vm307, %v1994, %v2008
    %v2035 = vsel %vm307, %v1995, %v2010
    %v2036 = vsel %vm307, %v1996, %v2012
    %v2037 = vsel %vm312, %v2033, %v2022
    %v2038 = vsel %vm312, %v2034, %v2024
    %v2039 = vsel %vm312, %v2035, %v2026
    %v2040 = vsel %vm312, %v2036, %v2028
    %s2041 = scalar_lea.vmem %s4, 10
    %v2042 = vld [vmem:[%s2041] sm:$0x1]
    %v2044 = vlaneseq
    %v2045 = vshrl.u32 %v2044, 7
    %v2046 = vsub.s32 0, %v2045
    %v2047 = vrot.slane %v2042, %v2046
    %v2050 = vsel %vm324, %v2037, 0
    %v2053 = vsel %vm324, %v2038, 0
    %v2056 = vsel %vm324, %v2039, 0
    %v2059 = vsel %vm324, %v2040, 0
    %2061 = vmatprep.subr.mxu0 0.0
    %2062 = vmatpush1.msra.mxu0 0.0
    %2063 = vmatprep.subr.mxu0 0.0
    %2064 = vmatpush1.msra.mxu0 0.0
    %2065 = vmatprep.subr.mxu0 0.0
    %2066 = vmatpush1.msra.mxu0 0.0
    %2067 = vmatprep.subr.mxu0 0.0
    %2068 = vmatpush1.msra.mxu0 0.0
    %2069 = vmatprep.subr.mxu0 0.0
    %2070 = vmatpush1.msra.mxu0 %v1992
    %2071 = vmatprep.subr.mxu0 0.0
    %2072 = vmatpush1.msra.mxu0 %v1991
    %2073 = vmatprep.subr.mxu0 0.0
    %2074 = vmatpush1.msra.mxu0 %v1990
    %2075 = vmatprep.subr.mxu0 0.0
    %2076 = vmatpush1.msra.mxu0 %v1989
    %2077 = vmatprep.subr.mxu0 0.0
    %2078 = vmatpush1.msra.mxu0 %v1988
    %2079 = vmatprep.subr.mxu0 0.0
    %2080 = vmatpush1.msra.mxu0 %v1987
    %2081 = vmatprep.subr.mxu0 0.0
    %2082 = vmatpush1.msra.mxu0 %v1986
    %2083 = vmatprep.subr.mxu0 0.0
    %2084 = vmatpush1.msra.mxu0 %v1985
    %2085 = vmatprep.subr.mxu0 0.0
    %2086 = vmatpush1.msra.mxu0 %v1984
    %2087 = vmatprep.subr.mxu0 0.0
    %2088 = vmatpush1.msra.mxu0 %v1983
    %2089 = vmatprep.subr.mxu0 0.0
    %2090 = vmatpush1.msra.mxu0 %v1982
    %2091 = vmatprep.subr.mxu0 0.0
    %2092 = vmatpush1.msra.mxu0 %v1981
    %2093 = vmatprep.subr.mxu0 0.0
    %2094 = vmatpush2.msra.mxu0 0.0
    %2095 = vmatprep.subr.mxu0 0.0
    %2096 = vmatpush2.msra.mxu0 0.0
    %2097 = vmatprep.subr.mxu0 0.0
    %2098 = vmatpush2.msra.mxu0 0.0
    %2099 = vmatprep.subr.mxu0 0.0
    %2100 = vmatpush2.msra.mxu0 0.0
    %2101 = vmatprep.subr.mxu0 0.0
    %2102 = vmatpush2.msra.mxu0 0.0
    %2103 = vmatprep.subr.mxu0 0.0
    %2104 = vmatpush2.msra.mxu0 0.0
    %2105 = vmatprep.subr.mxu0 0.0
    %2106 = vmatpush2.msra.mxu0 0.0
    %2107 = vmatprep.subr.mxu0 0.0
    %2108 = vmatpush2.msra.mxu0 0.0
    %2109 = vmatprep.subr.mxu0 0.0
    %2110 = vmatpush2.msra.mxu0 0.0
    %2111 = vmatprep.subr.mxu0 0.0
    %2112 = vmatpush2.msra.mxu0 0.0
    %2113 = vmatprep.subr.mxu0 0.0
    %2114 = vmatpush2.msra.mxu0 0.0
    %2115 = vmatprep.subr.mxu0 0.0
    %2116 = vmatpush2.msra.mxu0 0.0
    %2117 = vmatprep.subr.mxu0 0.0
    %2118 = vmatpush2.msra.mxu0 0.0
    %2119 = vmatprep.subr.mxu0 0.0
    %2120 = vmatpush2.msra.mxu0 0.0
    %2121 = vmatprep.subr.mxu0 0.0
    %2122 = vmatpush2.msra.mxu0 0.0
    %2123 = vmatprep.subr.mxu0 0.0
    %2124 = vmatpush2.msra.mxu0 0.0
    %2125 = vmatprep.mubr.f32.mxu0 0.0
    %2126 = vmatmul.mubr.f32.gmra.mxu0 %v2050
    %v2127 = vpop.f32.mrf.mxu0
    %v2128 = vadd.f32 %v2047, %v2127
    %v2129 = vpop.f32.mrf.mxu0
    %2130 = vmatprep.mubr.f32.mxu0 0.0
    %2131 = vmatmul.mubr.f32.gmra.mxu0 %v2053
    %v2132 = vpop.f32.mrf.mxu0
    %v2133 = vadd.f32 %v2047, %v2132
    %v2134 = vpop.f32.mrf.mxu0
    %2135 = vmatprep.mubr.f32.mxu0 0.0
    %2136 = vmatmul.mubr.f32.gmra.mxu0 %v2056
    %v2137 = vpop.f32.mrf.mxu0
    %v2138 = vadd.f32 %v2047, %v2137
    %v2139 = vpop.f32.mrf.mxu0
    %2140 = vmatprep.mubr.f32.mxu0 0.0
    %2141 = vmatmul.mubr.f32.gmra.mxu0 %v2059
    %v2142 = vpop.f32.mrf.mxu0
    %v2143 = vadd.f32 %v2047, %v2142
    %v2144 = vpop.f32.mrf.mxu0
    %2145 = vdwg.mxu0
    %v2146 = vmax.f32 %v2128, 0.0
    %v2147 = vmax.f32 %v2133, 0.0
    %v2148 = vmax.f32 %v2138, 0.0
    %v2149 = vmax.f32 %v2143, 0.0
    %s2150 = scalar_lea.vmem %s3, 1056
    %v2151 = vld [vmem:[%s2150 + $0x20] sm:$0xff]
    %v2152 = vld [vmem:[%s2150 + $0x28] sm:$0xff]
    %v2153 = vld [vmem:[%s2150 + $0x30] sm:$0xff]
    %v2154 = vld [vmem:[%s2150 + $0x38] sm:$0xff]
    %s2155 = scalar_lea.vmem %s4, 11
    %v2156 = vld [vmem:[%s2155] sm:$0x1]
    %v2158 = vlaneseq
    %v2159 = vshrl.u32 %v2158, 7
    %v2160 = vsub.s32 0, %v2159
    %v2161 = vrot.slane %v2156, %v2160
    %v2164 = vsel %vm307, %v2146, 0
    %v2167 = vsel %vm307, %v2147, 0
    %v2170 = vsel %vm307, %v2148, 0
    %v2173 = vsel %vm307, %v2149, 0
    %2175 = vmatprep.subr.mxu0 0.0
    %2176 = vmatpush1.msra.mxu0 0.0
    %2177 = vmatprep.subr.mxu0 0.0
    %2178 = vmatpush1.msra.mxu0 0.0
    %2179 = vmatprep.subr.mxu0 0.0
    %2180 = vmatpush1.msra.mxu0 0.0
    %2181 = vmatprep.subr.mxu0 0.0
    %2182 = vmatpush1.msra.mxu0 0.0
    %2183 = vmatprep.subr.mxu0 0.0
    %2184 = vmatpush1.msra.mxu0 0.0
    %2185 = vmatprep.subr.mxu0 0.0
    %2186 = vmatpush1.msra.mxu0 0.0
    %2187 = vmatprep.subr.mxu0 0.0
    %2188 = vmatpush1.msra.mxu0 0.0
    %2189 = vmatprep.subr.mxu0 0.0
    %2190 = vmatpush1.msra.mxu0 0.0
    %2191 = vmatprep.subr.mxu0 0.0
    %2192 = vmatpush1.msra.mxu0 0.0
    %2193 = vmatprep.subr.mxu0 0.0
    %2194 = vmatpush1.msra.mxu0 0.0
    %2195 = vmatprep.subr.mxu0 0.0
    %2196 = vmatpush1.msra.mxu0 0.0
    %2197 = vmatprep.subr.mxu0 0.0
    %2198 = vmatpush1.msra.mxu0 0.0
    %2199 = vmatprep.subr.mxu0 0.0
    %2200 = vmatpush1.msra.mxu0 %v2154
    %2201 = vmatprep.subr.mxu0 0.0
    %2202 = vmatpush1.msra.mxu0 %v2153
    %2203 = vmatprep.subr.mxu0 0.0
    %2204 = vmatpush1.msra.mxu0 %v2152
    %2205 = vmatprep.subr.mxu0 0.0
    %2206 = vmatpush1.msra.mxu0 %v2151
    %2207 = vmatprep.subr.mxu0 0.0
    %2208 = vmatpush2.msra.mxu0 0.0
    %2209 = vmatprep.subr.mxu0 0.0
    %2210 = vmatpush2.msra.mxu0 0.0
    %2211 = vmatprep.subr.mxu0 0.0
    %2212 = vmatpush2.msra.mxu0 0.0
    %2213 = vmatprep.subr.mxu0 0.0
    %2214 = vmatpush2.msra.mxu0 0.0
    %2215 = vmatprep.subr.mxu0 0.0
    %2216 = vmatpush2.msra.mxu0 0.0
    %2217 = vmatprep.subr.mxu0 0.0
    %2218 = vmatpush2.msra.mxu0 0.0
    %2219 = vmatprep.subr.mxu0 0.0
    %2220 = vmatpush2.msra.mxu0 0.0
    %2221 = vmatprep.subr.mxu0 0.0
    %2222 = vmatpush2.msra.mxu0 0.0
    %2223 = vmatprep.subr.mxu0 0.0
    %2224 = vmatpush2.msra.mxu0 0.0
    %2225 = vmatprep.subr.mxu0 0.0
    %2226 = vmatpush2.msra.mxu0 0.0
    %2227 = vmatprep.subr.mxu0 0.0
    %2228 = vmatpush2.msra.mxu0 0.0
    %2229 = vmatprep.subr.mxu0 0.0
    %2230 = vmatpush2.msra.mxu0 0.0
    %2231 = vmatprep.subr.mxu0 0.0
    %2232 = vmatpush2.msra.mxu0 0.0
    %2233 = vmatprep.subr.mxu0 0.0
    %2234 = vmatpush2.msra.mxu0 0.0
    %2235 = vmatprep.subr.mxu0 0.0
    %2236 = vmatpush2.msra.mxu0 0.0
    %2237 = vmatprep.subr.mxu0 0.0
    %2238 = vmatpush2.msra.mxu0 0.0
    %2239 = vmatprep.mubr.f32.mxu0 0.0
    %2240 = vmatmul.mubr.f32.gmra.mxu0 %v2164
    %v2241 = vpop.f32.mrf.mxu0
    %v2242 = vadd.f32 %v2161, %v2241
    %v2243 = vpop.f32.mrf.mxu0
    %2244 = vmatprep.mubr.f32.mxu0 0.0
    %2245 = vmatmul.mubr.f32.gmra.mxu0 %v2167
    %v2246 = vpop.f32.mrf.mxu0
    %v2247 = vadd.f32 %v2161, %v2246
    %v2248 = vpop.f32.mrf.mxu0
    %2249 = vmatprep.mubr.f32.mxu0 0.0
    %2250 = vmatmul.mubr.f32.gmra.mxu0 %v2170
    %v2251 = vpop.f32.mrf.mxu0
    %v2252 = vadd.f32 %v2161, %v2251
    %v2253 = vpop.f32.mrf.mxu0
    %2254 = vmatprep.mubr.f32.mxu0 0.0
    %2255 = vmatmul.mubr.f32.gmra.mxu0 %v2173
    %v2256 = vpop.f32.mrf.mxu0
    %v2257 = vadd.f32 %v2161, %v2256
    %v2258 = vpop.f32.mrf.mxu0
    %2259 = vdwg.mxu0
    %v2260 = vmax.f32 %v2242, 0.0
    %v2261 = vmax.f32 %v2247, 0.0
    %v2262 = vmax.f32 %v2252, 0.0
    %v2263 = vmax.f32 %v2257, 0.0
    %s2264 = scalar_lea.vmem %s3, 1152
    %v2265 = vld [vmem:[%s2264 + $0x20] sm:$0xff]
    %v2266 = vld [vmem:[%s2264 + $0x28] sm:$0xff]
    %v2267 = vld [vmem:[%s2264 + $0x30] sm:$0xff]
    %v2268 = vld [vmem:[%s2264 + $0x38] sm:$0xff]
    %s2269 = scalar_lea.vmem %s4, 12
    %v2270 = vld [vmem:[%s2269] sm:$0x1]
    %v2272 = vlaneseq
    %v2273 = vshrl.u32 %v2272, 7
    %v2274 = vsub.s32 0, %v2273
    %v2275 = vrot.slane %v2270, %v2274
    %v2278 = vsel %vm307, %v2260, 0
    %v2281 = vsel %vm307, %v2261, 0
    %v2284 = vsel %vm307, %v2262, 0
    %v2287 = vsel %vm307, %v2263, 0
    %2289 = vmatprep.subr.mxu0 0.0
    %2290 = vmatpush1.msra.mxu0 0.0
    %2291 = vmatprep.subr.mxu0 0.0
    %2292 = vmatpush1.msra.mxu0 0.0
    %2293 = vmatprep.subr.mxu0 0.0
    %2294 = vmatpush1.msra.mxu0 0.0
    %2295 = vmatprep.subr.mxu0 0.0
    %2296 = vmatpush1.msra.mxu0 0.0
    %2297 = vmatprep.subr.mxu0 0.0
    %2298 = vmatpush1.msra.mxu0 0.0
    %2299 = vmatprep.subr.mxu0 0.0
    %2300 = vmatpush1.msra.mxu0 0.0
    %2301 = vmatprep.subr.mxu0 0.0
    %2302 = vmatpush1.msra.mxu0 0.0
    %2303 = vmatprep.subr.mxu0 0.0
    %2304 = vmatpush1.msra.mxu0 0.0
    %2305 = vmatprep.subr.mxu0 0.0
    %2306 = vmatpush1.msra.mxu0 0.0
    %2307 = vmatprep.subr.mxu0 0.0
    %2308 = vmatpush1.msra.mxu0 0.0
    %2309 = vmatprep.subr.mxu0 0.0
    %2310 = vmatpush1.msra.mxu0 0.0
    %2311 = vmatprep.subr.mxu0 0.0
    %2312 = vmatpush1.msra.mxu0 0.0
    %2313 = vmatprep.subr.mxu0 0.0
    %2314 = vmatpush1.msra.mxu0 %v2268
    %2315 = vmatprep.subr.mxu0 0.0
    %2316 = vmatpush1.msra.mxu0 %v2267
    %2317 = vmatprep.subr.mxu0 0.0
    %2318 = vmatpush1.msra.mxu0 %v2266
    %2319 = vmatprep.subr.mxu0 0.0
    %2320 = vmatpush1.msra.mxu0 %v2265
    %2321 = vmatprep.subr.mxu0 0.0
    %2322 = vmatpush2.msra.mxu0 0.0
    %2323 = vmatprep.subr.mxu0 0.0
    %2324 = vmatpush2.msra.mxu0 0.0
    %2325 = vmatprep.subr.mxu0 0.0
    %2326 = vmatpush2.msra.mxu0 0.0
    %2327 = vmatprep.subr.mxu0 0.0
    %2328 = vmatpush2.msra.mxu0 0.0
    %2329 = vmatprep.subr.mxu0 0.0
    %2330 = vmatpush2.msra.mxu0 0.0
    %2331 = vmatprep.subr.mxu0 0.0
    %2332 = vmatpush2.msra.mxu0 0.0
    %2333 = vmatprep.subr.mxu0 0.0
    %2334 = vmatpush2.msra.mxu0 0.0
    %2335 = vmatprep.subr.mxu0 0.0
    %2336 = vmatpush2.msra.mxu0 0.0
    %2337 = vmatprep.subr.mxu0 0.0
    %2338 = vmatpush2.msra.mxu0 0.0
    %2339 = vmatprep.subr.mxu0 0.0
    %2340 = vmatpush2.msra.mxu0 0.0
    %2341 = vmatprep.subr.mxu0 0.0
    %2342 = vmatpush2.msra.mxu0 0.0
    %2343 = vmatprep.subr.mxu0 0.0
    %2344 = vmatpush2.msra.mxu0 0.0
    %2345 = vmatprep.subr.mxu0 0.0
    %2346 = vmatpush2.msra.mxu0 0.0
    %2347 = vmatprep.subr.mxu0 0.0
    %2348 = vmatpush2.msra.mxu0 0.0
    %2349 = vmatprep.subr.mxu0 0.0
    %2350 = vmatpush2.msra.mxu0 0.0
    %2351 = vmatprep.subr.mxu0 0.0
    %2352 = vmatpush2.msra.mxu0 0.0
    %2353 = vmatprep.mubr.f32.mxu0 0.0
    %2354 = vmatmul.mubr.f32.gmra.mxu0 %v2278
    %v2355 = vpop.f32.mrf.mxu0
    %v2356 = vadd.f32 %v2275, %v2355
    %v2357 = vpop.f32.mrf.mxu0
    %2358 = vmatprep.mubr.f32.mxu0 0.0
    %2359 = vmatmul.mubr.f32.gmra.mxu0 %v2281
    %v2360 = vpop.f32.mrf.mxu0
    %v2361 = vadd.f32 %v2275, %v2360
    %v2362 = vpop.f32.mrf.mxu0
    %2363 = vmatprep.mubr.f32.mxu0 0.0
    %2364 = vmatmul.mubr.f32.gmra.mxu0 %v2284
    %v2365 = vpop.f32.mrf.mxu0
    %v2366 = vadd.f32 %v2275, %v2365
    %v2367 = vpop.f32.mrf.mxu0
    %2368 = vmatprep.mubr.f32.mxu0 0.0
    %2369 = vmatmul.mubr.f32.gmra.mxu0 %v2287
    %v2370 = vpop.f32.mrf.mxu0
    %v2371 = vadd.f32 %v2275, %v2370
    %v2372 = vpop.f32.mrf.mxu0
    %2373 = vdwg.mxu0
    %v2374 = vmax.f32 %v2356, 0.0
    %v2375 = vmax.f32 %v2361, 0.0
    %v2376 = vmax.f32 %v2366, 0.0
    %v2377 = vmax.f32 %v2371, 0.0
    %s2378 = scalar_lea.vmem %s3, 1248
    %v2379 = vld [vmem:[%s2378] sm:$0xff]
    %v2380 = vld [vmem:[%s2378 + $0x8] sm:$0xff]
    %v2381 = vld [vmem:[%s2378 + $0x10] sm:$0xff]
    %v2382 = vld [vmem:[%s2378 + $0x18] sm:$0xff]
    %v2383 = vld [vmem:[%s2378 + $0x20] sm:$0xff]
    %v2384 = vld [vmem:[%s2378 + $0x28] sm:$0xff]
    %v2385 = vld [vmem:[%s2378 + $0x30] sm:$0xff]
    %v2386 = vld [vmem:[%s2378 + $0x38] sm:$0xff]
    %v2387 = vld [vmem:[%s2378 + $0x40] sm:$0xff]
    %v2388 = vld [vmem:[%s2378 + $0x48] sm:$0xff]
    %v2389 = vld [vmem:[%s2378 + $0x50] sm:$0xff]
    %v2390 = vld [vmem:[%s2378 + $0x58] sm:$0xff]
    %v2392 = vrot.slane %v2377, 7
    %v2397 = vrot.slane %v2374, 7
    %v2398 = vrot.slane %v2375, 7
    %v2399 = vsel %vm245, %v2397, %v2398
    %v2400 = vrot.slane %v2376, 7
    %v2401 = vsel %vm245, %v2398, %v2400
    %v2402 = vsel %vm245, %v2400, %v2392
    %v2407 = vsel %vm245, %v2392, %v2397
    %v2408 = vsel %vm81, %v2407, 0.0
    %v2409 = vsel %vm82, %v2399, 0.0
    %v2410 = vsel %vm83, %v2401, 0.0
    %v2411 = vsel %vm84, %v2402, 0.0
    %v2412 = vrot.slane %v2374, 1
    %v2413 = vrot.slane %v2375, 1
    %v2414 = vsel %vm261, %v2412, %v2413
    %v2415 = vrot.slane %v2376, 1
    %v2416 = vsel %vm261, %v2413, %v2415
    %v2417 = vrot.slane %v2377, 1
    %v2418 = vsel %vm261, %v2415, %v2417
    %v2424 = vsel %vm261, %v2417, %v2412
    %v2425 = vsel %vm85, %v2414, 0.0
    %v2426 = vsel %vm86, %v2416, 0.0
    %v2427 = vsel %vm87, %v2418, 0.0
    %v2428 = vsel %vm88, %v2424, 0.0
    %2429 = vrot.lane.b32.xlu0 %v2374, 32
    %v2430 = vpop.permute.xlu0 %2429
    %2431 = vrot.lane.b32.xlu0 %v2375, 32
    %v2432 = vpop.permute.xlu0 %2431
    %2433 = vrot.lane.b32.xlu0 %v2376, 32
    %v2434 = vpop.permute.xlu0 %2433
    %2435 = vrot.lane.b32.xlu0 %v2377, 32
    %v2436 = vpop.permute.xlu0 %2435
    %2445 = vrot.lane.b32.xlu0 %v2425, 64
    %v2446 = vpop.permute.xlu0 %2445
    %2447 = vrot.lane.b32.xlu0 %v2426, 64
    %v2448 = vpop.permute.xlu0 %2447
    %2449 = vrot.lane.b32.xlu0 %v2427, 64
    %v2450 = vpop.permute.xlu0 %2449
    %2451 = vrot.lane.b32.xlu0 %v2428, 64
    %v2452 = vpop.permute.xlu0 %2451
    %v2457 = vsel %vm307, %v2408, %v2430
    %v2458 = vsel %vm307, %v2409, %v2432
    %v2459 = vsel %vm307, %v2410, %v2434
    %v2460 = vsel %vm307, %v2411, %v2436
    %v2461 = vsel %vm312, %v2457, %v2446
    %v2462 = vsel %vm312, %v2458, %v2448
    %v2463 = vsel %vm312, %v2459, %v2450
    %v2464 = vsel %vm312, %v2460, %v2452
    %s2465 = scalar_lea.vmem %s4, 13
    %v2466 = vld [vmem:[%s2465] sm:$0x1]
    %v2468 = vlaneseq
    %v2469 = vshrl.u32 %v2468, 7
    %v2470 = vsub.s32 0, %v2469
    %v2471 = vrot.slane %v2466, %v2470
    %v2474 = vsel %vm324, %v2461, 0
    %v2477 = vsel %vm324, %v2462, 0
    %v2480 = vsel %vm324, %v2463, 0
    %v2483 = vsel %vm324, %v2464, 0
    %2485 = vmatprep.subr.mxu0 0.0
    %2486 = vmatpush1.msra.mxu0 0.0
    %2487 = vmatprep.subr.mxu0 0.0
    %2488 = vmatpush1.msra.mxu0 0.0
    %2489 = vmatprep.subr.mxu0 0.0
    %2490 = vmatpush1.msra.mxu0 0.0
    %2491 = vmatprep.subr.mxu0 0.0
    %2492 = vmatpush1.msra.mxu0 0.0
    %2493 = vmatprep.subr.mxu0 0.0
    %2494 = vmatpush1.msra.mxu0 %v2390
    %2495 = vmatprep.subr.mxu0 0.0
    %2496 = vmatpush1.msra.mxu0 %v2389
    %2497 = vmatprep.subr.mxu0 0.0
    %2498 = vmatpush1.msra.mxu0 %v2388
    %2499 = vmatprep.subr.mxu0 0.0
    %2500 = vmatpush1.msra.mxu0 %v2387
    %2501 = vmatprep.subr.mxu0 0.0
    %2502 = vmatpush1.msra.mxu0 %v2386
    %2503 = vmatprep.subr.mxu0 0.0
    %2504 = vmatpush1.msra.mxu0 %v2385
    %2505 = vmatprep.subr.mxu0 0.0
    %2506 = vmatpush1.msra.mxu0 %v2384
    %2507 = vmatprep.subr.mxu0 0.0
    %2508 = vmatpush1.msra.mxu0 %v2383
    %2509 = vmatprep.subr.mxu0 0.0
    %2510 = vmatpush1.msra.mxu0 %v2382
    %2511 = vmatprep.subr.mxu0 0.0
    %2512 = vmatpush1.msra.mxu0 %v2381
    %2513 = vmatprep.subr.mxu0 0.0
    %2514 = vmatpush1.msra.mxu0 %v2380
    %2515 = vmatprep.subr.mxu0 0.0
    %2516 = vmatpush1.msra.mxu0 %v2379
    %2517 = vmatprep.subr.mxu0 0.0
    %2518 = vmatpush2.msra.mxu0 0.0
    %2519 = vmatprep.subr.mxu0 0.0
    %2520 = vmatpush2.msra.mxu0 0.0
    %2521 = vmatprep.subr.mxu0 0.0
    %2522 = vmatpush2.msra.mxu0 0.0
    %2523 = vmatprep.subr.mxu0 0.0
    %2524 = vmatpush2.msra.mxu0 0.0
    %2525 = vmatprep.subr.mxu0 0.0
    %2526 = vmatpush2.msra.mxu0 0.0
    %2527 = vmatprep.subr.mxu0 0.0
    %2528 = vmatpush2.msra.mxu0 0.0
    %2529 = vmatprep.subr.mxu0 0.0
    %2530 = vmatpush2.msra.mxu0 0.0
    %2531 = vmatprep.subr.mxu0 0.0
    %2532 = vmatpush2.msra.mxu0 0.0
    %2533 = vmatprep.subr.mxu0 0.0
    %2534 = vmatpush2.msra.mxu0 0.0
    %2535 = vmatprep.subr.mxu0 0.0
    %2536 = vmatpush2.msra.mxu0 0.0
    %2537 = vmatprep.subr.mxu0 0.0
    %2538 = vmatpush2.msra.mxu0 0.0
    %2539 = vmatprep.subr.mxu0 0.0
    %2540 = vmatpush2.msra.mxu0 0.0
    %2541 = vmatprep.subr.mxu0 0.0
    %2542 = vmatpush2.msra.mxu0 0.0
    %2543 = vmatprep.subr.mxu0 0.0
    %2544 = vmatpush2.msra.mxu0 0.0
    %2545 = vmatprep.subr.mxu0 0.0
    %2546 = vmatpush2.msra.mxu0 0.0
    %2547 = vmatprep.subr.mxu0 0.0
    %2548 = vmatpush2.msra.mxu0 0.0
    %2549 = vmatprep.mubr.f32.mxu0 0.0
    %2550 = vmatmul.mubr.f32.gmra.mxu0 %v2474
    %v2551 = vpop.f32.mrf.mxu0
    %v2552 = vadd.f32 %v2471, %v2551
    %v2553 = vpop.f32.mrf.mxu0
    %2554 = vmatprep.mubr.f32.mxu0 0.0
    %2555 = vmatmul.mubr.f32.gmra.mxu0 %v2477
    %v2556 = vpop.f32.mrf.mxu0
    %v2557 = vadd.f32 %v2471, %v2556
    %v2558 = vpop.f32.mrf.mxu0
    %2559 = vmatprep.mubr.f32.mxu0 0.0
    %2560 = vmatmul.mubr.f32.gmra.mxu0 %v2480
    %v2561 = vpop.f32.mrf.mxu0
    %v2562 = vadd.f32 %v2471, %v2561
    %v2563 = vpop.f32.mrf.mxu0
    %2564 = vmatprep.mubr.f32.mxu0 0.0
    %2565 = vmatmul.mubr.f32.gmra.mxu0 %v2483
    %v2566 = vpop.f32.mrf.mxu0
    %v2567 = vadd.f32 %v2471, %v2566
    %v2568 = vpop.f32.mrf.mxu0
    %2569 = vdwg.mxu0
    %v2570 = vmax.f32 %v2552, 0.0
    %v2571 = vmax.f32 %v2557, 0.0
    %v2572 = vmax.f32 %v2562, 0.0
    %v2573 = vmax.f32 %v2567, 0.0
    %v2574 = vadd.f32 %v1401, %v2570
    %v2575 = vadd.f32 %v1402, %v2571
    %v2576 = vadd.f32 %v1403, %v2572
    %v2577 = vadd.f32 %v1404, %v2573
    %v2578 = vld [vmem:[%s5] sm:$0xff]
    %v2579 = vld [vmem:[%s5 + $0x8] sm:$0xff]
    %v2580 = vld [vmem:[%s5 + $0x10] sm:$0xff]
    %v2581 = vld [vmem:[%s5 + $0x18] sm:$0xff]
    %v2583 = vsel %vm307, %v2574, 0
    %v2586 = vsel %vm307, %v2575, 0
    %v2589 = vsel %vm307, %v2576, 0
    %v2592 = vsel %vm307, %v2577, 0
    %2594 = vmatprep.subr.mxu0 0.0
    %2595 = vmatpush1.msra.mxu0 0.0
    %2596 = vmatprep.subr.mxu0 0.0
    %2597 = vmatpush1.msra.mxu0 0.0
    %2598 = vmatprep.subr.mxu0 0.0
    %2599 = vmatpush1.msra.mxu0 0.0
    %2600 = vmatprep.subr.mxu0 0.0
    %2601 = vmatpush1.msra.mxu0 0.0
    %2602 = vmatprep.subr.mxu0 0.0
    %2603 = vmatpush1.msra.mxu0 0.0
    %2604 = vmatprep.subr.mxu0 0.0
    %2605 = vmatpush1.msra.mxu0 0.0
    %2606 = vmatprep.subr.mxu0 0.0
    %2607 = vmatpush1.msra.mxu0 0.0
    %2608 = vmatprep.subr.mxu0 0.0
    %2609 = vmatpush1.msra.mxu0 0.0
    %2610 = vmatprep.subr.mxu0 0.0
    %2611 = vmatpush1.msra.mxu0 0.0
    %2612 = vmatprep.subr.mxu0 0.0
    %2613 = vmatpush1.msra.mxu0 0.0
    %2614 = vmatprep.subr.mxu0 0.0
    %2615 = vmatpush1.msra.mxu0 0.0
    %2616 = vmatprep.subr.mxu0 0.0
    %2617 = vmatpush1.msra.mxu0 0.0
    %2618 = vmatprep.subr.mxu0 0.0
    %2619 = vmatpush1.msra.mxu0 %v2581
    %2620 = vmatprep.subr.mxu0 0.0
    %2621 = vmatpush1.msra.mxu0 %v2580
    %2622 = vmatprep.subr.mxu0 0.0
    %2623 = vmatpush1.msra.mxu0 %v2579
    %2624 = vmatprep.subr.mxu0 0.0
    %2625 = vmatpush1.msra.mxu0 %v2578
    %2626 = vmatprep.subr.mxu0 0.0
    %2627 = vmatpush2.msra.mxu0 0.0
    %2628 = vmatprep.subr.mxu0 0.0
    %2629 = vmatpush2.msra.mxu0 0.0
    %2630 = vmatprep.subr.mxu0 0.0
    %2631 = vmatpush2.msra.mxu0 0.0
    %2632 = vmatprep.subr.mxu0 0.0
    %2633 = vmatpush2.msra.mxu0 0.0
    %2634 = vmatprep.subr.mxu0 0.0
    %2635 = vmatpush2.msra.mxu0 0.0
    %2636 = vmatprep.subr.mxu0 0.0
    %2637 = vmatpush2.msra.mxu0 0.0
    %2638 = vmatprep.subr.mxu0 0.0
    %2639 = vmatpush2.msra.mxu0 0.0
    %2640 = vmatprep.subr.mxu0 0.0
    %2641 = vmatpush2.msra.mxu0 0.0
    %2642 = vmatprep.subr.mxu0 0.0
    %2643 = vmatpush2.msra.mxu0 0.0
    %2644 = vmatprep.subr.mxu0 0.0
    %2645 = vmatpush2.msra.mxu0 0.0
    %2646 = vmatprep.subr.mxu0 0.0
    %2647 = vmatpush2.msra.mxu0 0.0
    %2648 = vmatprep.subr.mxu0 0.0
    %2649 = vmatpush2.msra.mxu0 0.0
    %2650 = vmatprep.subr.mxu0 0.0
    %2651 = vmatpush2.msra.mxu0 0.0
    %2652 = vmatprep.subr.mxu0 0.0
    %2653 = vmatpush2.msra.mxu0 0.0
    %2654 = vmatprep.subr.mxu0 0.0
    %2655 = vmatpush2.msra.mxu0 0.0
    %2656 = vmatprep.subr.mxu0 0.0
    %2657 = vmatpush2.msra.mxu0 0.0
    %2658 = vmatprep.mubr.f32.mxu0 0.0
    %2659 = vmatmul.mubr.f32.gmra.mxu0 %v2583
    %v2660 = vpop.f32.mrf.mxu0
    %v2661 = vadd.f32 0.0, %v2660
    %v2662 = vpop.f32.mrf.mxu0
    %2663 = vmatprep.mubr.f32.mxu0 0.0
    %2664 = vmatmul.mubr.f32.gmra.mxu0 %v2586
    %v2665 = vpop.f32.mrf.mxu0
    %v2666 = vadd.f32 0.0, %v2665
    %v2667 = vpop.f32.mrf.mxu0
    %2668 = vmatprep.mubr.f32.mxu0 0.0
    %2669 = vmatmul.mubr.f32.gmra.mxu0 %v2589
    %v2670 = vpop.f32.mrf.mxu0
    %v2671 = vadd.f32 0.0, %v2670
    %v2672 = vpop.f32.mrf.mxu0
    %2673 = vmatprep.mubr.f32.mxu0 0.0
    %2674 = vmatmul.mubr.f32.gmra.mxu0 %v2592
    %v2675 = vpop.f32.mrf.mxu0
    %v2676 = vadd.f32 0.0, %v2675
    %v2677 = vpop.f32.mrf.mxu0
    %2678 = vdwg.mxu0
    %2679 = vst [vmem:[#allocation2] sm:$0xff] %v2661
    %2680 = vst [vmem:[#allocation2 + $0x8] sm:$0xff] %v2666
    %2681 = vst [vmem:[#allocation2 + $0x10] sm:$0xff] %v2671
    %2682 = vst [vmem:[#allocation2 + $0x18] sm:$0xff] %v2676
    // Predicated region
    $region26: #{tpu_custom_call.1} parent=1 // pred_check
      _
    $region27: #{tpu_custom_call.1} parent=1 // pred_check_branch
      %2684 = sbr.rel (0) target = $region29
    $region28: #{tpu_custom_call.1} parent=1 // pred_region
      %s2686 = ssub.s32 512, 512
      %2687 = vsyncadd [#allocation3], %s2686
      %s2688 = sshll.u32 [#allocation2], 4
      %s2689 = int_to_ptr.vmem [resolvable:$true] %s2688
      %2694 = dma.vmem_to_hbm [thread:$0]  %s2689, 512, %s6, [#allocation3], 128, 128, 8
    $region29: #{tpu_custom_call.1} parent=1 // pred_fallthru
      _
    // Predicated region
    $region30: #{tpu_custom_call.1} parent=1 // pred_check
      _
    $region31: #{tpu_custom_call.1} parent=1 // pred_check_branch
      %2696 = sbr.rel (0) target = $region33
    $region32: #{tpu_custom_call.1} parent=1 // pred_region
      %2697 = dma.done [#allocation3], 512
    $region33: #{tpu_custom_call.1} parent=1 // pred_fallthru
      _
    %2698 = vsyncpa [#allocation3], 1

</llo_original>
